<compile_context>
chip_gen: v6e
topology: v6e:2x2x1
jax: 0.10.0
libtpu: 0.0.40
codegen_flags: <defaults>
</compile_context>

<pallas_src>
import functools

import jax
import jax.numpy as jnp
from jax.experimental import pallas as pl
from jax.experimental.pallas import tpu as pltpu


def _lstm_kernel(gx_ref, whh_ref, h0_ref, out_ref, h_scr, c_scr):
    """Recurrent part only.

    gx_ref : (Tc, B, 4*Hp) f32  -- precomputed x @ W_ih^T + bias for this chunk
    whh_ref: (Hp, 4*Hp)    bf16 -- W_hh^T, hidden padded to Hp (lane multiple)
    h0_ref : (B, Hp)       f32  -- initial h (== initial c) state
    out_ref: (Tc, B, Hp)   f32  -- hidden states for this chunk
    h_scr/c_scr: (B, Hp)   f32  -- recurrent state carried across grid steps
    """
    Hp = h_scr.shape[1]
    Tc = out_ref.shape[0]

    @pl.when(pl.program_id(0) == 0)
    def _():
        h_scr[...] = h0_ref[...]
        c_scr[...] = h0_ref[...]

    def step(tt, carry):
        h, c = carry
        # Only the recurrent matmul lives in the serial loop (bf16 MXU, f32 acc).
        gates = gx_ref[tt] + jnp.dot(
            h.astype(jnp.bfloat16), whh_ref[...],
            preferred_element_type=jnp.float32)          # (B, 4*Hp) f32

        # Lane-aligned gate slices (Hp is a multiple of 128): i | f | g | o.
        i_t = jax.nn.sigmoid(gates[:, 0 * Hp:1 * Hp])
        f_t = jax.nn.sigmoid(gates[:, 1 * Hp:2 * Hp])
        g_t = jnp.tanh(gates[:, 2 * Hp:3 * Hp])
        o_t = jax.nn.sigmoid(gates[:, 3 * Hp:4 * Hp])

        c_new = f_t * c + i_t * g_t
        h_new = o_t * jnp.tanh(c_new)
        out_ref[tt] = h_new
        return h_new, c_new

    h, c = jax.lax.fori_loop(0, Tc, step, (h_scr[...], c_scr[...]), unroll=True)
    h_scr[...] = h
    c_scr[...] = c


@functools.partial(jax.jit, static_argnames=("time_chunk",))
def vib_lstm_forward(x, init_states, w_ih, w_hh, b_ih, b_hh, *, time_chunk=8):
    """x: (batch, seq, input) f32, init_states: (hidden,) f32.
    Returns hidden_seq: (batch, seq, hidden) f32 (matches the PyTorch module)."""
    bs, seq_sz, input_sz = x.shape
    hidden_sz = w_hh.shape[1]

    # Pad hidden to a lane multiple so every gate slice is lane-aligned.
    Hp = ((hidden_sz + 127) // 128) * 128
    pad_h = Hp - hidden_sz

    # W_ih: (4H, I) -> gate-blocked & padded -> transposed (I, 4*Hp), bf16.
    wih_t = jnp.pad(w_ih.reshape(4, hidden_sz, input_sz),
                    ((0, 0), (0, pad_h), (0, 0)))
    wih_t = wih_t.reshape(4 * Hp, input_sz).T.astype(jnp.bfloat16)   # (I, 4Hp)

    # W_hh: (4H, H) -> padded on both hidden dims -> transposed (Hp, 4*Hp), bf16.
    whh_t = jnp.pad(w_hh.reshape(4, hidden_sz, hidden_sz),
                    ((0, 0), (0, pad_h), (0, pad_h)))
    whh_t = whh_t.reshape(4 * Hp, Hp).T.astype(jnp.bfloat16)          # (Hp, 4Hp)

    # Combined bias, gate-blocked & padded: (4*Hp,) f32.
    bias = jnp.pad((b_ih + b_hh).astype(jnp.float32).reshape(4, hidden_sz),
                   ((0, 0), (0, pad_h))).reshape(4 * Hp)

    # Hoisted input projection: one (B*S, I) @ (I, 4*Hp) bf16 matmul, f32 acc,
    # bias fused into its epilogue.  Then lay out time-major for the kernel.
    gx = jnp.dot(x.reshape(bs * seq_sz, input_sz).astype(jnp.bfloat16), wih_t,
                 preferred_element_type=jnp.float32) + bias[None, :]
    gx = gx.reshape(bs, seq_sz, 4 * Hp).transpose(1, 0, 2)            # (S, B, 4Hp)

    # Pad the sequence to a multiple of the time chunk.
    tc = min(time_chunk, seq_sz)
    n_chunks = pl.cdiv(seq_sz, tc)
    s_pad = n_chunks * tc
    if s_pad != seq_sz:
        gx = jnp.pad(gx, ((0, s_pad - seq_sz), (0, 0), (0, 0)))

    # init_states is used for both h0 and c0; padded lanes are zero and stay
    # zero through the recurrence (zero weight rows/cols for padded hidden).
    h0 = jnp.pad(init_states.astype(jnp.float32), (0, pad_h))
    h0 = jnp.broadcast_to(h0, (bs, Hp))

    out_sbh = pl.pallas_call(
        _lstm_kernel,
        out_shape=jax.ShapeDtypeStruct((s_pad, bs, Hp), jnp.float32),
        grid_spec=pltpu.PrefetchScalarGridSpec(
            num_scalar_prefetch=0,
            grid=(n_chunks,),
            in_specs=[
                pl.BlockSpec((tc, bs, 4 * Hp), lambda t: (t, 0, 0)),  # gates_x chunk
                pl.BlockSpec((Hp, 4 * Hp), lambda t: (0, 0)),         # W_hh^T (bf16)
                pl.BlockSpec((bs, Hp), lambda t: (0, 0)),             # h0/c0
            ],
            out_specs=pl.BlockSpec((tc, bs, Hp), lambda t: (t, 0, 0)),
            scratch_shapes=[
                pltpu.VMEM((bs, Hp), jnp.float32),   # h state
                pltpu.VMEM((bs, Hp), jnp.float32),   # c state
            ],
        ),
        compiler_params=pltpu.CompilerParams(
            dimension_semantics=("arbitrary",),  # sequential recurrence over time
        ),
    )(gx, whh_t, h0)

    # Drop sequence / hidden padding and return PyTorch layout (B, S, H).
    return jnp.transpose(out_sbh[:seq_sz, :, :hidden_sz], (1, 0, 2))


def _reference_forward(x, init_states, w_ih, w_hh, b_ih, b_hh):
    """Plain-JAX f32 replica of the PyTorch forward for verification."""
    bs, seq_sz, _ = x.shape
    H = w_hh.shape[1]
    h_t = jnp.broadcast_to(init_states, (bs, H)).astype(jnp.float32)
    c_t = jnp.broadcast_to(init_states, (bs, H)).astype(jnp.float32)
    outs = []
    for t in range(seq_sz):
        x_t = x[:, t, :]
        gates = x_t @ w_ih.T + b_ih + (h_t @ w_hh.T + b_hh)
        ing, forgetg, cellg, outg = jnp.split(gates, 4, axis=1)
        i_t = jax.nn.sigmoid(ing)
        f_t = jax.nn.sigmoid(forgetg)
        g_t = jnp.tanh(cellg)
        o_t = jax.nn.sigmoid(outg)
        c_t = f_t * c_t + i_t * g_t
        h_t = o_t * jnp.tanh(c_t)
        outs.append(h_t)
    return jnp.stack(outs, axis=1)  # (B, S, H)


if __name__ == "__main__":
    key = jax.random.PRNGKey(0)
    k_x, k_h0, k_wih, k_whh = jax.random.split(key, 4)

    batch, seq, input_sz, hidden_sz = 2, 8, 16, 32

    # Deterministic parameter init mimicking init_weights():
    # xavier-uniform for 2-D weights, zeros for biases.
    def xavier_uniform(k, shape):
        fan_out, fan_in = shape
        limit = (6.0 / (fan_in + fan_out)) ** 0.5
        return jax.random.uniform(k, shape, jnp.float32, -limit, limit)

    w_ih = xavier_uniform(k_wih, (4 * hidden_sz, input_sz))
    w_hh = xavier_uniform(k_whh, (4 * hidden_sz, hidden_sz))
    b_ih = jnp.zeros((4 * hidden_sz,), jnp.float32)
    b_hh = jnp.zeros((4 * hidden_sz,), jnp.float32)

    x = jax.random.normal(k_x, (batch, seq, input_sz), jnp.float32)
    init_states = jax.random.normal(k_h0, (hidden_sz,), jnp.float32)

    out = vib_lstm_forward(x, init_states, w_ih, w_hh, b_ih, b_hh)
    out = jax.block_until_ready(out)

    ref = _reference_forward(x, init_states, w_ih, w_hh, b_ih, b_hh)
    assert out.shape == (batch, seq, hidden_sz)
    # Tolerance loosened vs the pure-f32 reference because the kernel runs its
    # matmuls on bf16 MXU inputs (f32 accumulation / f32 state & gates).
    assert jnp.allclose(out, ref, atol=3e-2, rtol=3e-2), "mismatch vs reference"

    print("KERNEL_OK")
</pallas_src>

<mosaic_0001>
module attributes {stable_mosaic.version = 11 : i64} {
  func.func @_lstm_kernel(%arg0: i32, %arg1: memref<8x2x512xf32, #tpu.memory_space<vmem>>, %arg2: memref<128x512xbf16, #tpu.memory_space<vmem>>, %arg3: memref<2x128xf32, #tpu.memory_space<vmem>>, %arg4: memref<8x2x128xf32, #tpu.memory_space<vmem>>, %arg5: memref<2x128xf32, #tpu.memory_space<vmem>>, %arg6: memref<2x128xf32, #tpu.memory_space<vmem>>) attributes {dimension_semantics = [#tpu.dimension_semantics<arbitrary>], iteration_bounds = array<i64: 1>, scalar_prefetch = 0 : i64, scratch_operands = 2 : i64, tpu.core_type = #tpu.core_type<tc>, window_params = [{transform_indices = @transform_0, window_bounds = array<i64: 8, 2, 512>}, {pipeline_mode = #tpu.pipeline_mode<synchronous>, transform_indices = @transform_1, window_bounds = array<i64: 128, 512>}, {pipeline_mode = #tpu.pipeline_mode<synchronous>, transform_indices = @transform_2, window_bounds = array<i64: 2, 128>}, {transform_indices = @transform_3, window_bounds = array<i64: 8, 2, 128>}]} {
    %c0_i32 = arith.constant 0 : i32
    %0 = arith.cmpi eq, %arg0, %c0_i32 : i32
    %1 = arith.extui %0 : i1 to i32
    %c0_i32_0 = arith.constant 0 : i32
    %2 = arith.cmpi ne, %1, %c0_i32_0 : i32
    scf.if %2 {
      %c0_88 = arith.constant 0 : index
      %c0_89 = arith.constant 0 : index
      %295 = vector.load %arg3[%c0_88, %c0_89] : memref<2x128xf32, #tpu.memory_space<vmem>>, vector<2x128xf32>
      %c0_90 = arith.constant 0 : index
      %c0_91 = arith.constant 0 : index
      %296 = vector.load %arg5[%c0_90, %c0_91] : memref<2x128xf32, #tpu.memory_space<vmem>>, vector<2x128xf32>
      tpu.vector_store %arg5[%c0_90, %c0_91], %295 {strides = array<i32>} : memref<2x128xf32, #tpu.memory_space<vmem>>, vector<2x128xf32>,
      %c0_92 = arith.constant 0 : index
      %c0_93 = arith.constant 0 : index
      %297 = vector.load %arg3[%c0_92, %c0_93] : memref<2x128xf32, #tpu.memory_space<vmem>>, vector<2x128xf32>
      %c0_94 = arith.constant 0 : index
      %c0_95 = arith.constant 0 : index
      %298 = vector.load %arg6[%c0_94, %c0_95] : memref<2x128xf32, #tpu.memory_space<vmem>>, vector<2x128xf32>
      tpu.vector_store %arg6[%c0_94, %c0_95], %297 {strides = array<i32>} : memref<2x128xf32, #tpu.memory_space<vmem>>, vector<2x128xf32>,
    } else {
    }
    %c0 = arith.constant 0 : index
    %c0_1 = arith.constant 0 : index
    %3 = vector.load %arg5[%c0, %c0_1] : memref<2x128xf32, #tpu.memory_space<vmem>>, vector<2x128xf32>
    %c0_2 = arith.constant 0 : index
    %c0_3 = arith.constant 0 : index
    %4 = vector.load %arg6[%c0_2, %c0_3] : memref<2x128xf32, #tpu.memory_space<vmem>>, vector<2x128xf32>
    %c0_i32_4 = arith.constant 0 : i32
    %5 = arith.index_cast %c0_i32_4 : i32 to index
    %c0_5 = arith.constant 0 : index
    %c0_6 = arith.constant 0 : index
    %6 = vector.load %arg1[%5, %c0_5, %c0_6] : memref<8x2x512xf32, #tpu.memory_space<vmem>>, vector<1x2x512xf32>
    %7 = vector.shape_cast %6 : vector<1x2x512xf32> to vector<2x512xf32>
    %8 = arith.truncf %3 : vector<2x128xf32> to vector<2x128xbf16>
    %c0_7 = arith.constant 0 : index
    %c0_8 = arith.constant 0 : index
    %9 = vector.load %arg2[%c0_7, %c0_8] : memref<128x512xbf16, #tpu.memory_space<vmem>>, vector<128x512xbf16>
    %cst = arith.constant dense<0.000000e+00> : vector<2x512xf32>
    %10 = tpu.matmul %8, %9, %cst {dimension_numbers = #tpu.dot_dimension_numbers<[1], [0], [0], [1], [0, 0, 1, 1], [], []>} : vector<2x128xbf16>, vector<128x512xbf16>, vector<2x512xf32> -> vector<2x512xf32>
    %11 = arith.addf %7, %10 : vector<2x512xf32>
    %12 = vector.extract_strided_slice %11 {offsets = [0, 0], sizes = [2, 128], strides = [1, 1]} : vector<2x512xf32> to vector<2x128xf32>
    %13 = arith.negf %12 : vector<2x128xf32>
    %14 = math.exp %13 : vector<2x128xf32>
    %cst_9 = arith.constant 1.000000e+00 : f32
    %15 = vector.broadcast %cst_9 : f32 to vector<2x128xf32>
    %16 = arith.addf %15, %14 : vector<2x128xf32>
    %17 = arith.divf %15, %16 : vector<2x128xf32>
    %18 = vector.extract_strided_slice %11 {offsets = [0, 128], sizes = [2, 128], strides = [1, 1]} : vector<2x512xf32> to vector<2x128xf32>
    %19 = arith.negf %18 : vector<2x128xf32>
    %20 = math.exp %19 : vector<2x128xf32>
    %cst_10 = arith.constant 1.000000e+00 : f32
    %21 = vector.broadcast %cst_10 : f32 to vector<2x128xf32>
    %22 = arith.addf %21, %20 : vector<2x128xf32>
    %23 = arith.divf %21, %22 : vector<2x128xf32>
    %24 = vector.extract_strided_slice %11 {offsets = [0, 256], sizes = [2, 128], strides = [1, 1]} : vector<2x512xf32> to vector<2x128xf32>
    %25 = math.tanh %24 : vector<2x128xf32>
    %26 = vector.extract_strided_slice %11 {offsets = [0, 384], sizes = [2, 128], strides = [1, 1]} : vector<2x512xf32> to vector<2x128xf32>
    %27 = arith.negf %26 : vector<2x128xf32>
    %28 = math.exp %27 : vector<2x128xf32>
    %cst_11 = arith.constant 1.000000e+00 : f32
    %29 = vector.broadcast %cst_11 : f32 to vector<2x128xf32>
    %30 = arith.addf %29, %28 : vector<2x128xf32>
    %31 = arith.divf %29, %30 : vector<2x128xf32>
    %32 = arith.mulf %23, %4 : vector<2x128xf32>
    %33 = arith.mulf %17, %25 : vector<2x128xf32>
    %34 = arith.addf %32, %33 : vector<2x128xf32>
    %35 = math.tanh %34 : vector<2x128xf32>
    %36 = arith.mulf %31, %35 : vector<2x128xf32>
    %37 = arith.index_cast %c0_i32_4 : i32 to index
    %c0_12 = arith.constant 0 : index
    %c0_13 = arith.constant 0 : index
    %38 = vector.load %arg4[%37, %c0_12, %c0_13] : memref<8x2x128xf32, #tpu.memory_space<vmem>>, vector<1x2x128xf32>
    %39 = vector.shape_cast %38 : vector<1x2x128xf32> to vector<2x128xf32>
    %40 = vector.shape_cast %36 : vector<2x128xf32> to vector<1x2x128xf32>
    tpu.vector_store %arg4[%37, %c0_12, %c0_13], %40 {strides = array<i32>} : memref<8x2x128xf32, #tpu.memory_space<vmem>>, vector<1x2x128xf32>,
    %c1_i32 = arith.constant 1 : i32
    %41 = arith.index_cast %c1_i32 : i32 to index
    %c0_14 = arith.constant 0 : index
    %c0_15 = arith.constant 0 : index
    %42 = vector.load %arg1[%41, %c0_14, %c0_15] : memref<8x2x512xf32, #tpu.memory_space<vmem>>, vector<1x2x512xf32>
    %43 = vector.shape_cast %42 : vector<1x2x512xf32> to vector<2x512xf32>
    %44 = arith.truncf %36 : vector<2x128xf32> to vector<2x128xbf16>
    %c0_16 = arith.constant 0 : index
    %c0_17 = arith.constant 0 : index
    %45 = vector.load %arg2[%c0_16, %c0_17] : memref<128x512xbf16, #tpu.memory_space<vmem>>, vector<128x512xbf16>
    %cst_18 = arith.constant dense<0.000000e+00> : vector<2x512xf32>
    %46 = tpu.matmul %44, %45, %cst_18 {dimension_numbers = #tpu.dot_dimension_numbers<[1], [0], [0], [1], [0, 0, 1, 1], [], []>} : vector<2x128xbf16>, vector<128x512xbf16>, vector<2x512xf32> -> vector<2x512xf32>
    %47 = arith.addf %43, %46 : vector<2x512xf32>
    %48 = vector.extract_strided_slice %47 {offsets = [0, 0], sizes = [2, 128], strides = [1, 1]} : vector<2x512xf32> to vector<2x128xf32>
    %49 = arith.negf %48 : vector<2x128xf32>
    %50 = math.exp %49 : vector<2x128xf32>
    %cst_19 = arith.constant 1.000000e+00 : f32
    %51 = vector.broadcast %cst_19 : f32 to vector<2x128xf32>
    %52 = arith.addf %51, %50 : vector<2x128xf32>
    %53 = arith.divf %51, %52 : vector<2x128xf32>
    %54 = vector.extract_strided_slice %47 {offsets = [0, 128], sizes = [2, 128], strides = [1, 1]} : vector<2x512xf32> to vector<2x128xf32>
    %55 = arith.negf %54 : vector<2x128xf32>
    %56 = math.exp %55 : vector<2x128xf32>
    %cst_20 = arith.constant 1.000000e+00 : f32
    %57 = vector.broadcast %cst_20 : f32 to vector<2x128xf32>
    %58 = arith.addf %57, %56 : vector<2x128xf32>
    %59 = arith.divf %57, %58 : vector<2x128xf32>
    %60 = vector.extract_strided_slice %47 {offsets = [0, 256], sizes = [2, 128], strides = [1, 1]} : vector<2x512xf32> to vector<2x128xf32>
    %61 = math.tanh %60 : vector<2x128xf32>
    %62 = vector.extract_strided_slice %47 {offsets = [0, 384], sizes = [2, 128], strides = [1, 1]} : vector<2x512xf32> to vector<2x128xf32>
    %63 = arith.negf %62 : vector<2x128xf32>
    %64 = math.exp %63 : vector<2x128xf32>
    %cst_21 = arith.constant 1.000000e+00 : f32
    %65 = vector.broadcast %cst_21 : f32 to vector<2x128xf32>
    %66 = arith.addf %65, %64 : vector<2x128xf32>
    %67 = arith.divf %65, %66 : vector<2x128xf32>
    %68 = arith.mulf %59, %34 : vector<2x128xf32>
    %69 = arith.mulf %53, %61 : vector<2x128xf32>
    %70 = arith.addf %68, %69 : vector<2x128xf32>
    %71 = math.tanh %70 : vector<2x128xf32>
    %72 = arith.mulf %67, %71 : vector<2x128xf32>
    %73 = arith.index_cast %c1_i32 : i32 to index
    %c0_22 = arith.constant 0 : index
    %c0_23 = arith.constant 0 : index
    %74 = vector.load %arg4[%73, %c0_22, %c0_23] : memref<8x2x128xf32, #tpu.memory_space<vmem>>, vector<1x2x128xf32>
    %75 = vector.shape_cast %74 : vector<1x2x128xf32> to vector<2x128xf32>
    %76 = vector.shape_cast %72 : vector<2x128xf32> to vector<1x2x128xf32>
    tpu.vector_store %arg4[%73, %c0_22, %c0_23], %76 {strides = array<i32>} : memref<8x2x128xf32, #tpu.memory_space<vmem>>, vector<1x2x128xf32>,
    %c2_i32 = arith.constant 2 : i32
    %77 = arith.index_cast %c2_i32 : i32 to index
    %c0_24 = arith.constant 0 : index
    %c0_25 = arith.constant 0 : index
    %78 = vector.load %arg1[%77, %c0_24, %c0_25] : memref<8x2x512xf32, #tpu.memory_space<vmem>>, vector<1x2x512xf32>
    %79 = vector.shape_cast %78 : vector<1x2x512xf32> to vector<2x512xf32>
    %80 = arith.truncf %72 : vector<2x128xf32> to vector<2x128xbf16>
    %c0_26 = arith.constant 0 : index
    %c0_27 = arith.constant 0 : index
    %81 = vector.load %arg2[%c0_26, %c0_27] : memref<128x512xbf16, #tpu.memory_space<vmem>>, vector<128x512xbf16>
    %cst_28 = arith.constant dense<0.000000e+00> : vector<2x512xf32>
    %82 = tpu.matmul %80, %81, %cst_28 {dimension_numbers = #tpu.dot_dimension_numbers<[1], [0], [0], [1], [0, 0, 1, 1], [], []>} : vector<2x128xbf16>, vector<128x512xbf16>, vector<2x512xf32> -> vector<2x512xf32>
    %83 = arith.addf %79, %82 : vector<2x512xf32>
    %84 = vector.extract_strided_slice %83 {offsets = [0, 0], sizes = [2, 128], strides = [1, 1]} : vector<2x512xf32> to vector<2x128xf32>
    %85 = arith.negf %84 : vector<2x128xf32>
    %86 = math.exp %85 : vector<2x128xf32>
    %cst_29 = arith.constant 1.000000e+00 : f32
    %87 = vector.broadcast %cst_29 : f32 to vector<2x128xf32>
    %88 = arith.addf %87, %86 : vector<2x128xf32>
    %89 = arith.divf %87, %88 : vector<2x128xf32>
    %90 = vector.extract_strided_slice %83 {offsets = [0, 128], sizes = [2, 128], strides = [1, 1]} : vector<2x512xf32> to vector<2x128xf32>
    %91 = arith.negf %90 : vector<2x128xf32>
    %92 = math.exp %91 : vector<2x128xf32>
    %cst_30 = arith.constant 1.000000e+00 : f32
    %93 = vector.broadcast %cst_30 : f32 to vector<2x128xf32>
    %94 = arith.addf %93, %92 : vector<2x128xf32>
    %95 = arith.divf %93, %94 : vector<2x128xf32>
    %96 = vector.extract_strided_slice %83 {offsets = [0, 256], sizes = [2, 128], strides = [1, 1]} : vector<2x512xf32> to vector<2x128xf32>
    %97 = math.tanh %96 : vector<2x128xf32>
    %98 = vector.extract_strided_slice %83 {offsets = [0, 384], sizes = [2, 128], strides = [1, 1]} : vector<2x512xf32> to vector<2x128xf32>
    %99 = arith.negf %98 : vector<2x128xf32>
    %100 = math.exp %99 : vector<2x128xf32>
    %cst_31 = arith.constant 1.000000e+00 : f32
    %101 = vector.broadcast %cst_31 : f32 to vector<2x128xf32>
    %102 = arith.addf %101, %100 : vector<2x128xf32>
    %103 = arith.divf %101, %102 : vector<2x128xf32>
    %104 = arith.mulf %95, %70 : vector<2x128xf32>
    %105 = arith.mulf %89, %97 : vector<2x128xf32>
    %106 = arith.addf %104, %105 : vector<2x128xf32>
    %107 = math.tanh %106 : vector<2x128xf32>
    %108 = arith.mulf %103, %107 : vector<2x128xf32>
    %109 = arith.index_cast %c2_i32 : i32 to index
    %c0_32 = arith.constant 0 : index
    %c0_33 = arith.constant 0 : index
    %110 = vector.load %arg4[%109, %c0_32, %c0_33] : memref<8x2x128xf32, #tpu.memory_space<vmem>>, vector<1x2x128xf32>
    %111 = vector.shape_cast %110 : vector<1x2x128xf32> to vector<2x128xf32>
    %112 = vector.shape_cast %108 : vector<2x128xf32> to vector<1x2x128xf32>
    tpu.vector_store %arg4[%109, %c0_32, %c0_33], %112 {strides = array<i32>} : memref<8x2x128xf32, #tpu.memory_space<vmem>>, vector<1x2x128xf32>,
    %c3_i32 = arith.constant 3 : i32
    %113 = arith.index_cast %c3_i32 : i32 to index
    %c0_34 = arith.constant 0 : index
    %c0_35 = arith.constant 0 : index
    %114 = vector.load %arg1[%113, %c0_34, %c0_35] : memref<8x2x512xf32, #tpu.memory_space<vmem>>, vector<1x2x512xf32>
    %115 = vector.shape_cast %114 : vector<1x2x512xf32> to vector<2x512xf32>
    %116 = arith.truncf %108 : vector<2x128xf32> to vector<2x128xbf16>
    %c0_36 = arith.constant 0 : index
    %c0_37 = arith.constant 0 : index
    %117 = vector.load %arg2[%c0_36, %c0_37] : memref<128x512xbf16, #tpu.memory_space<vmem>>, vector<128x512xbf16>
    %cst_38 = arith.constant dense<0.000000e+00> : vector<2x512xf32>
    %118 = tpu.matmul %116, %117, %cst_38 {dimension_numbers = #tpu.dot_dimension_numbers<[1], [0], [0], [1], [0, 0, 1, 1], [], []>} : vector<2x128xbf16>, vector<128x512xbf16>, vector<2x512xf32> -> vector<2x512xf32>
    %119 = arith.addf %115, %118 : vector<2x512xf32>
    %120 = vector.extract_strided_slice %119 {offsets = [0, 0], sizes = [2, 128], strides = [1, 1]} : vector<2x512xf32> to vector<2x128xf32>
    %121 = arith.negf %120 : vector<2x128xf32>
    %122 = math.exp %121 : vector<2x128xf32>
    %cst_39 = arith.constant 1.000000e+00 : f32
    %123 = vector.broadcast %cst_39 : f32 to vector<2x128xf32>
    %124 = arith.addf %123, %122 : vector<2x128xf32>
    %125 = arith.divf %123, %124 : vector<2x128xf32>
    %126 = vector.extract_strided_slice %119 {offsets = [0, 128], sizes = [2, 128], strides = [1, 1]} : vector<2x512xf32> to vector<2x128xf32>
    %127 = arith.negf %126 : vector<2x128xf32>
    %128 = math.exp %127 : vector<2x128xf32>
    %cst_40 = arith.constant 1.000000e+00 : f32
    %129 = vector.broadcast %cst_40 : f32 to vector<2x128xf32>
    %130 = arith.addf %129, %128 : vector<2x128xf32>
    %131 = arith.divf %129, %130 : vector<2x128xf32>
    %132 = vector.extract_strided_slice %119 {offsets = [0, 256], sizes = [2, 128], strides = [1, 1]} : vector<2x512xf32> to vector<2x128xf32>
    %133 = math.tanh %132 : vector<2x128xf32>
    %134 = vector.extract_strided_slice %119 {offsets = [0, 384], sizes = [2, 128], strides = [1, 1]} : vector<2x512xf32> to vector<2x128xf32>
    %135 = arith.negf %134 : vector<2x128xf32>
    %136 = math.exp %135 : vector<2x128xf32>
    %cst_41 = arith.constant 1.000000e+00 : f32
    %137 = vector.broadcast %cst_41 : f32 to vector<2x128xf32>
    %138 = arith.addf %137, %136 : vector<2x128xf32>
    %139 = arith.divf %137, %138 : vector<2x128xf32>
    %140 = arith.mulf %131, %106 : vector<2x128xf32>
    %141 = arith.mulf %125, %133 : vector<2x128xf32>
    %142 = arith.addf %140, %141 : vector<2x128xf32>
    %143 = math.tanh %142 : vector<2x128xf32>
    %144 = arith.mulf %139, %143 : vector<2x128xf32>
    %145 = arith.index_cast %c3_i32 : i32 to index
    %c0_42 = arith.constant 0 : index
    %c0_43 = arith.constant 0 : index
    %146 = vector.load %arg4[%145, %c0_42, %c0_43] : memref<8x2x128xf32, #tpu.memory_space<vmem>>, vector<1x2x128xf32>
    %147 = vector.shape_cast %146 : vector<1x2x128xf32> to vector<2x128xf32>
    %148 = vector.shape_cast %144 : vector<2x128xf32> to vector<1x2x128xf32>
    tpu.vector_store %arg4[%145, %c0_42, %c0_43], %148 {strides = array<i32>} : memref<8x2x128xf32, #tpu.memory_space<vmem>>, vector<1x2x128xf32>,
    %c4_i32 = arith.constant 4 : i32
    %149 = arith.index_cast %c4_i32 : i32 to index
    %c0_44 = arith.constant 0 : index
    %c0_45 = arith.constant 0 : index
    %150 = vector.load %arg1[%149, %c0_44, %c0_45] : memref<8x2x512xf32, #tpu.memory_space<vmem>>, vector<1x2x512xf32>
    %151 = vector.shape_cast %150 : vector<1x2x512xf32> to vector<2x512xf32>
    %152 = arith.truncf %144 : vector<2x128xf32> to vector<2x128xbf16>
    %c0_46 = arith.constant 0 : index
    %c0_47 = arith.constant 0 : index
    %153 = vector.load %arg2[%c0_46, %c0_47] : memref<128x512xbf16, #tpu.memory_space<vmem>>, vector<128x512xbf16>
    %cst_48 = arith.constant dense<0.000000e+00> : vector<2x512xf32>
    %154 = tpu.matmul %152, %153, %cst_48 {dimension_numbers = #tpu.dot_dimension_numbers<[1], [0], [0], [1], [0, 0, 1, 1], [], []>} : vector<2x128xbf16>, vector<128x512xbf16>, vector<2x512xf32> -> vector<2x512xf32>
    %155 = arith.addf %151, %154 : vector<2x512xf32>
    %156 = vector.extract_strided_slice %155 {offsets = [0, 0], sizes = [2, 128], strides = [1, 1]} : vector<2x512xf32> to vector<2x128xf32>
    %157 = arith.negf %156 : vector<2x128xf32>
    %158 = math.exp %157 : vector<2x128xf32>
    %cst_49 = arith.constant 1.000000e+00 : f32
    %159 = vector.broadcast %cst_49 : f32 to vector<2x128xf32>
    %160 = arith.addf %159, %158 : vector<2x128xf32>
    %161 = arith.divf %159, %160 : vector<2x128xf32>
    %162 = vector.extract_strided_slice %155 {offsets = [0, 128], sizes = [2, 128], strides = [1, 1]} : vector<2x512xf32> to vector<2x128xf32>
    %163 = arith.negf %162 : vector<2x128xf32>
    %164 = math.exp %163 : vector<2x128xf32>
    %cst_50 = arith.constant 1.000000e+00 : f32
    %165 = vector.broadcast %cst_50 : f32 to vector<2x128xf32>
    %166 = arith.addf %165, %164 : vector<2x128xf32>
    %167 = arith.divf %165, %166 : vector<2x128xf32>
    %168 = vector.extract_strided_slice %155 {offsets = [0, 256], sizes = [2, 128], strides = [1, 1]} : vector<2x512xf32> to vector<2x128xf32>
    %169 = math.tanh %168 : vector<2x128xf32>
    %170 = vector.extract_strided_slice %155 {offsets = [0, 384], sizes = [2, 128], strides = [1, 1]} : vector<2x512xf32> to vector<2x128xf32>
    %171 = arith.negf %170 : vector<2x128xf32>
    %172 = math.exp %171 : vector<2x128xf32>
    %cst_51 = arith.constant 1.000000e+00 : f32
    %173 = vector.broadcast %cst_51 : f32 to vector<2x128xf32>
    %174 = arith.addf %173, %172 : vector<2x128xf32>
    %175 = arith.divf %173, %174 : vector<2x128xf32>
    %176 = arith.mulf %167, %142 : vector<2x128xf32>
    %177 = arith.mulf %161, %169 : vector<2x128xf32>
    %178 = arith.addf %176, %177 : vector<2x128xf32>
    %179 = math.tanh %178 : vector<2x128xf32>
    %180 = arith.mulf %175, %179 : vector<2x128xf32>
    %181 = arith.index_cast %c4_i32 : i32 to index
    %c0_52 = arith.constant 0 : index
    %c0_53 = arith.constant 0 : index
    %182 = vector.load %arg4[%181, %c0_52, %c0_53] : memref<8x2x128xf32, #tpu.memory_space<vmem>>, vector<1x2x128xf32>
    %183 = vector.shape_cast %182 : vector<1x2x128xf32> to vector<2x128xf32>
    %184 = vector.shape_cast %180 : vector<2x128xf32> to vector<1x2x128xf32>
    tpu.vector_store %arg4[%181, %c0_52, %c0_53], %184 {strides = array<i32>} : memref<8x2x128xf32, #tpu.memory_space<vmem>>, vector<1x2x128xf32>,
    %c5_i32 = arith.constant 5 : i32
    %185 = arith.index_cast %c5_i32 : i32 to index
    %c0_54 = arith.constant 0 : index
    %c0_55 = arith.constant 0 : index
    %186 = vector.load %arg1[%185, %c0_54, %c0_55] : memref<8x2x512xf32, #tpu.memory_space<vmem>>, vector<1x2x512xf32>
    %187 = vector.shape_cast %186 : vector<1x2x512xf32> to vector<2x512xf32>
    %188 = arith.truncf %180 : vector<2x128xf32> to vector<2x128xbf16>
    %c0_56 = arith.constant 0 : index
    %c0_57 = arith.constant 0 : index
    %189 = vector.load %arg2[%c0_56, %c0_57] : memref<128x512xbf16, #tpu.memory_space<vmem>>, vector<128x512xbf16>
    %cst_58 = arith.constant dense<0.000000e+00> : vector<2x512xf32>
    %190 = tpu.matmul %188, %189, %cst_58 {dimension_numbers = #tpu.dot_dimension_numbers<[1], [0], [0], [1], [0, 0, 1, 1], [], []>} : vector<2x128xbf16>, vector<128x512xbf16>, vector<2x512xf32> -> vector<2x512xf32>
    %191 = arith.addf %187, %190 : vector<2x512xf32>
    %192 = vector.extract_strided_slice %191 {offsets = [0, 0], sizes = [2, 128], strides = [1, 1]} : vector<2x512xf32> to vector<2x128xf32>
    %193 = arith.negf %192 : vector<2x128xf32>
    %194 = math.exp %193 : vector<2x128xf32>
    %cst_59 = arith.constant 1.000000e+00 : f32
    %195 = vector.broadcast %cst_59 : f32 to vector<2x128xf32>
    %196 = arith.addf %195, %194 : vector<2x128xf32>
    %197 = arith.divf %195, %196 : vector<2x128xf32>
    %198 = vector.extract_strided_slice %191 {offsets = [0, 128], sizes = [2, 128], strides = [1, 1]} : vector<2x512xf32> to vector<2x128xf32>
    %199 = arith.negf %198 : vector<2x128xf32>
    %200 = math.exp %199 : vector<2x128xf32>
    %cst_60 = arith.constant 1.000000e+00 : f32
    %201 = vector.broadcast %cst_60 : f32 to vector<2x128xf32>
    %202 = arith.addf %201, %200 : vector<2x128xf32>
    %203 = arith.divf %201, %202 : vector<2x128xf32>
    %204 = vector.extract_strided_slice %191 {offsets = [0, 256], sizes = [2, 128], strides = [1, 1]} : vector<2x512xf32> to vector<2x128xf32>
    %205 = math.tanh %204 : vector<2x128xf32>
    %206 = vector.extract_strided_slice %191 {offsets = [0, 384], sizes = [2, 128], strides = [1, 1]} : vector<2x512xf32> to vector<2x128xf32>
    %207 = arith.negf %206 : vector<2x128xf32>
    %208 = math.exp %207 : vector<2x128xf32>
    %cst_61 = arith.constant 1.000000e+00 : f32
    %209 = vector.broadcast %cst_61 : f32 to vector<2x128xf32>
    %210 = arith.addf %209, %208 : vector<2x128xf32>
    %211 = arith.divf %209, %210 : vector<2x128xf32>
    %212 = arith.mulf %203, %178 : vector<2x128xf32>
    %213 = arith.mulf %197, %205 : vector<2x128xf32>
    %214 = arith.addf %212, %213 : vector<2x128xf32>
    %215 = math.tanh %214 : vector<2x128xf32>
    %216 = arith.mulf %211, %215 : vector<2x128xf32>
    %217 = arith.index_cast %c5_i32 : i32 to index
    %c0_62 = arith.constant 0 : index
    %c0_63 = arith.constant 0 : index
    %218 = vector.load %arg4[%217, %c0_62, %c0_63] : memref<8x2x128xf32, #tpu.memory_space<vmem>>, vector<1x2x128xf32>
    %219 = vector.shape_cast %218 : vector<1x2x128xf32> to vector<2x128xf32>
    %220 = vector.shape_cast %216 : vector<2x128xf32> to vector<1x2x128xf32>
    tpu.vector_store %arg4[%217, %c0_62, %c0_63], %220 {strides = array<i32>} : memref<8x2x128xf32, #tpu.memory_space<vmem>>, vector<1x2x128xf32>,
    %c6_i32 = arith.constant 6 : i32
    %221 = arith.index_cast %c6_i32 : i32 to index
    %c0_64 = arith.constant 0 : index
    %c0_65 = arith.constant 0 : index
    %222 = vector.load %arg1[%221, %c0_64, %c0_65] : memref<8x2x512xf32, #tpu.memory_space<vmem>>, vector<1x2x512xf32>
    %223 = vector.shape_cast %222 : vector<1x2x512xf32> to vector<2x512xf32>
    %224 = arith.truncf %216 : vector<2x128xf32> to vector<2x128xbf16>
    %c0_66 = arith.constant 0 : index
    %c0_67 = arith.constant 0 : index
    %225 = vector.load %arg2[%c0_66, %c0_67] : memref<128x512xbf16, #tpu.memory_space<vmem>>, vector<128x512xbf16>
    %cst_68 = arith.constant dense<0.000000e+00> : vector<2x512xf32>
    %226 = tpu.matmul %224, %225, %cst_68 {dimension_numbers = #tpu.dot_dimension_numbers<[1], [0], [0], [1], [0, 0, 1, 1], [], []>} : vector<2x128xbf16>, vector<128x512xbf16>, vector<2x512xf32> -> vector<2x512xf32>
    %227 = arith.addf %223, %226 : vector<2x512xf32>
    %228 = vector.extract_strided_slice %227 {offsets = [0, 0], sizes = [2, 128], strides = [1, 1]} : vector<2x512xf32> to vector<2x128xf32>
    %229 = arith.negf %228 : vector<2x128xf32>
    %230 = math.exp %229 : vector<2x128xf32>
    %cst_69 = arith.constant 1.000000e+00 : f32
    %231 = vector.broadcast %cst_69 : f32 to vector<2x128xf32>
    %232 = arith.addf %231, %230 : vector<2x128xf32>
    %233 = arith.divf %231, %232 : vector<2x128xf32>
    %234 = vector.extract_strided_slice %227 {offsets = [0, 128], sizes = [2, 128], strides = [1, 1]} : vector<2x512xf32> to vector<2x128xf32>
    %235 = arith.negf %234 : vector<2x128xf32>
    %236 = math.exp %235 : vector<2x128xf32>
    %cst_70 = arith.constant 1.000000e+00 : f32
    %237 = vector.broadcast %cst_70 : f32 to vector<2x128xf32>
    %238 = arith.addf %237, %236 : vector<2x128xf32>
    %239 = arith.divf %237, %238 : vector<2x128xf32>
    %240 = vector.extract_strided_slice %227 {offsets = [0, 256], sizes = [2, 128], strides = [1, 1]} : vector<2x512xf32> to vector<2x128xf32>
    %241 = math.tanh %240 : vector<2x128xf32>
    %242 = vector.extract_strided_slice %227 {offsets = [0, 384], sizes = [2, 128], strides = [1, 1]} : vector<2x512xf32> to vector<2x128xf32>
    %243 = arith.negf %242 : vector<2x128xf32>
    %244 = math.exp %243 : vector<2x128xf32>
    %cst_71 = arith.constant 1.000000e+00 : f32
    %245 = vector.broadcast %cst_71 : f32 to vector<2x128xf32>
    %246 = arith.addf %245, %244 : vector<2x128xf32>
    %247 = arith.divf %245, %246 : vector<2x128xf32>
    %248 = arith.mulf %239, %214 : vector<2x128xf32>
    %249 = arith.mulf %233, %241 : vector<2x128xf32>
    %250 = arith.addf %248, %249 : vector<2x128xf32>
    %251 = math.tanh %250 : vector<2x128xf32>
    %252 = arith.mulf %247, %251 : vector<2x128xf32>
    %253 = arith.index_cast %c6_i32 : i32 to index
    %c0_72 = arith.constant 0 : index
    %c0_73 = arith.constant 0 : index
    %254 = vector.load %arg4[%253, %c0_72, %c0_73] : memref<8x2x128xf32, #tpu.memory_space<vmem>>, vector<1x2x128xf32>
    %255 = vector.shape_cast %254 : vector<1x2x128xf32> to vector<2x128xf32>
    %256 = vector.shape_cast %252 : vector<2x128xf32> to vector<1x2x128xf32>
    tpu.vector_store %arg4[%253, %c0_72, %c0_73], %256 {strides = array<i32>} : memref<8x2x128xf32, #tpu.memory_space<vmem>>, vector<1x2x128xf32>,
    %c7_i32 = arith.constant 7 : i32
    %257 = arith.index_cast %c7_i32 : i32 to index
    %c0_74 = arith.constant 0 : index
    %c0_75 = arith.constant 0 : index
    %258 = vector.load %arg1[%257, %c0_74, %c0_75] : memref<8x2x512xf32, #tpu.memory_space<vmem>>, vector<1x2x512xf32>
    %259 = vector.shape_cast %258 : vector<1x2x512xf32> to vector<2x512xf32>
    %260 = arith.truncf %252 : vector<2x128xf32> to vector<2x128xbf16>
    %c0_76 = arith.constant 0 : index
    %c0_77 = arith.constant 0 : index
    %261 = vector.load %arg2[%c0_76, %c0_77] : memref<128x512xbf16, #tpu.memory_space<vmem>>, vector<128x512xbf16>
    %cst_78 = arith.constant dense<0.000000e+00> : vector<2x512xf32>
    %262 = tpu.matmul %260, %261, %cst_78 {dimension_numbers = #tpu.dot_dimension_numbers<[1], [0], [0], [1], [0, 0, 1, 1], [], []>} : vector<2x128xbf16>, vector<128x512xbf16>, vector<2x512xf32> -> vector<2x512xf32>
    %263 = arith.addf %259, %262 : vector<2x512xf32>
    %264 = vector.extract_strided_slice %263 {offsets = [0, 0], sizes = [2, 128], strides = [1, 1]} : vector<2x512xf32> to vector<2x128xf32>
    %265 = arith.negf %264 : vector<2x128xf32>
    %266 = math.exp %265 : vector<2x128xf32>
    %cst_79 = arith.constant 1.000000e+00 : f32
    %267 = vector.broadcast %cst_79 : f32 to vector<2x128xf32>
    %268 = arith.addf %267, %266 : vector<2x128xf32>
    %269 = arith.divf %267, %268 : vector<2x128xf32>
    %270 = vector.extract_strided_slice %263 {offsets = [0, 128], sizes = [2, 128], strides = [1, 1]} : vector<2x512xf32> to vector<2x128xf32>
    %271 = arith.negf %270 : vector<2x128xf32>
    %272 = math.exp %271 : vector<2x128xf32>
    %cst_80 = arith.constant 1.000000e+00 : f32
    %273 = vector.broadcast %cst_80 : f32 to vector<2x128xf32>
    %274 = arith.addf %273, %272 : vector<2x128xf32>
    %275 = arith.divf %273, %274 : vector<2x128xf32>
    %276 = vector.extract_strided_slice %263 {offsets = [0, 256], sizes = [2, 128], strides = [1, 1]} : vector<2x512xf32> to vector<2x128xf32>
    %277 = math.tanh %276 : vector<2x128xf32>
    %278 = vector.extract_strided_slice %263 {offsets = [0, 384], sizes = [2, 128], strides = [1, 1]} : vector<2x512xf32> to vector<2x128xf32>
    %279 = arith.negf %278 : vector<2x128xf32>
    %280 = math.exp %279 : vector<2x128xf32>
    %cst_81 = arith.constant 1.000000e+00 : f32
    %281 = vector.broadcast %cst_81 : f32 to vector<2x128xf32>
    %282 = arith.addf %281, %280 : vector<2x128xf32>
    %283 = arith.divf %281, %282 : vector<2x128xf32>
    %284 = arith.mulf %275, %250 : vector<2x128xf32>
    %285 = arith.mulf %269, %277 : vector<2x128xf32>
    %286 = arith.addf %284, %285 : vector<2x128xf32>
    %287 = math.tanh %286 : vector<2x128xf32>
    %288 = arith.mulf %283, %287 : vector<2x128xf32>
    %289 = arith.index_cast %c7_i32 : i32 to index
    %c0_82 = arith.constant 0 : index
    %c0_83 = arith.constant 0 : index
    %290 = vector.load %arg4[%289, %c0_82, %c0_83] : memref<8x2x128xf32, #tpu.memory_space<vmem>>, vector<1x2x128xf32>
    %291 = vector.shape_cast %290 : vector<1x2x128xf32> to vector<2x128xf32>
    %292 = vector.shape_cast %288 : vector<2x128xf32> to vector<1x2x128xf32>
    tpu.vector_store %arg4[%289, %c0_82, %c0_83], %292 {strides = array<i32>} : memref<8x2x128xf32, #tpu.memory_space<vmem>>, vector<1x2x128xf32>,
    %c8_i32 = arith.constant 8 : i32
    %c0_84 = arith.constant 0 : index
    %c0_85 = arith.constant 0 : index
    %293 = vector.load %arg5[%c0_84, %c0_85] : memref<2x128xf32, #tpu.memory_space<vmem>>, vector<2x128xf32>
    tpu.vector_store %arg5[%c0_84, %c0_85], %288 {strides = array<i32>} : memref<2x128xf32, #tpu.memory_space<vmem>>, vector<2x128xf32>,
    %c0_86 = arith.constant 0 : index
    %c0_87 = arith.constant 0 : index
    %294 = vector.load %arg6[%c0_86, %c0_87] : memref<2x128xf32, #tpu.memory_space<vmem>>, vector<2x128xf32>
    tpu.vector_store %arg6[%c0_86, %c0_87], %286 {strides = array<i32>} : memref<2x128xf32, #tpu.memory_space<vmem>>, vector<2x128xf32>,
    return
  }
  func.func @transform_0(%arg0: i32) -> (i32, i32, i32) {
    %c0_i32 = arith.constant 0 : i32
    %c0_i32_0 = arith.constant 0 : i32
    %c0_i32_1 = arith.constant 0 : i32
    return %arg0, %c0_i32, %c0_i32_0 : i32, i32, i32
  }
  func.func @transform_1(%arg0: i32) -> (i32, i32) {
    %c0_i32 = arith.constant 0 : i32
    %c0_i32_0 = arith.constant 0 : i32
    %c0_i32_1 = arith.constant 0 : i32
    return %c0_i32, %c0_i32_0 : i32, i32
  }
  func.func @transform_2(%arg0: i32) -> (i32, i32) {
    %c0_i32 = arith.constant 0 : i32
    %c0_i32_0 = arith.constant 0 : i32
    %c0_i32_1 = arith.constant 0 : i32
    return %c0_i32, %c0_i32_0 : i32, i32
  }
  func.func @transform_3(%arg0: i32) -> (i32, i32, i32) {
    %c0_i32 = arith.constant 0 : i32
    %c0_i32_0 = arith.constant 0 : i32
    %c0_i32_1 = arith.constant 0 : i32
    return %arg0, %c0_i32, %c0_i32_0 : i32, i32, i32
  }
}

</mosaic_0001>

<llo_original>
// kernel: vib_lstm_forward.1
$region0: #{vib_lstm_forward.1}
  #allocation0 [shape = 'u32[]', space=smem, size = 0x4, offset = 0x4, fixed_abs, tag = 'smem constant byte address 0x4 - core index']
  #allocation1 [shape = 'u32[144,128]{1,0:T(1,128)}', space=vmem, size = 0x12000, scoped, tag = 'internal scratch']
  #allocation2 [shape = 'f32[2,128]{1,0:T(2,128)}', space=vmem, size = 0x400, scoped, tag = 'scratch operand']
  #allocation3 [shape = 'f32[2,128]{1,0:T(2,128)}', space=vmem, size = 0x400, scoped, tag = 'scratch operand']
  %s0 = inlined_call_operand.vmem [shape: f32[8,2,512], index: 0, kind: input, shape index: {}]
  %s1 = inlined_call_operand.vmem [shape: bf16[128,512], index: 1, kind: input, shape index: {}]
  %s2 = inlined_call_operand.vmem [shape: f32[2,128], index: 2, kind: input, shape index: {}]
  %s3 = inlined_call_operand.vmem [shape: f32[8,2,128], index: 3, kind: output, shape index: {}]
  %s4 = sld [smem:[#allocation0]]
  $region26: #{vib_lstm_forward.1} parent=0
    _
  %s6 = ssub.s32 1, %s4
  %s7 = scalar_select 0, %s6, %s4
  // Predicated region
  $region2: #{vib_lstm_forward.1} parent=0 // pred_check
    _
  $region3: #{vib_lstm_forward.1} parent=0 // pred_check_branch
    %9 = sbr.rel (0) target = $region5
  $region4: #{vib_lstm_forward.1} parent=0 // pred_region
    _
  $region5: #{vib_lstm_forward.1} parent=0 // pred_fallthru
    _
  // Predicated region
  $region6: #{vib_lstm_forward.1} parent=0 // pred_check
    _
  $region7: #{vib_lstm_forward.1} parent=0 // pred_check_branch
    %11 = sbr.rel (0) target = $region9
  $region8: #{vib_lstm_forward.1} parent=0 // pred_region
    _
  $region9: #{vib_lstm_forward.1} parent=0 // pred_fallthru
    _
  // Predicated region
  $region10: #{vib_lstm_forward.1} parent=0 // pred_check
    _
  $region11: #{vib_lstm_forward.1} parent=0 // pred_check_branch
    %13 = sbr.rel (0) target = $region13
  $region12: #{vib_lstm_forward.1} parent=0 // pred_region
    _
  $region13: #{vib_lstm_forward.1} parent=0 // pred_fallthru
    _
  %p15 = scmp.eq.s32.totalorder 0, 0
  // Predicated region
  $region14: #{vib_lstm_forward.1} parent=0 // pred_check
    %p16 = pneg %p15
  $region15: #{vib_lstm_forward.1} parent=0 // pred_check_branch
    %18 = sbr.rel (%p16) target = $region17
  $region16: #{vib_lstm_forward.1} parent=0 // pred_region
    %v19 = vld [vmem:[%s2] sm:$0x3]
    %20 = vst [vmem:[#allocation2] sm:$0x3] %v19
    %v21 = vld [vmem:[%s2] sm:$0x3]
    %22 = vst [vmem:[#allocation3] sm:$0x3] %v21
  $region17: #{vib_lstm_forward.1} parent=0 // pred_fallthru
    _
  %v23 = vld [vmem:[#allocation2] sm:$0x3]
  %v24 = vld [vmem:[#allocation3] sm:$0x3]
  %v25 = vld [vmem:[%s0] sm:$0xff]
  %v26 = vpack.c.bf16 %v23, %v23
  %v27 = vld [vmem:[%s1] sm:$0xff]
  %v28 = vld [vmem:[%s1 + $0x8] sm:$0xff]
  %v29 = vld [vmem:[%s1 + $0x10] sm:$0xff]
  %v30 = vld [vmem:[%s1 + $0x18] sm:$0xff]
  %v31 = vld [vmem:[%s1 + $0x20] sm:$0xff]
  %v32 = vld [vmem:[%s1 + $0x28] sm:$0xff]
  %v33 = vld [vmem:[%s1 + $0x30] sm:$0xff]
  %v34 = vld [vmem:[%s1 + $0x38] sm:$0xff]
  %v35 = vld [vmem:[%s1 + $0x40] sm:$0xff]
  %v36 = vld [vmem:[%s1 + $0x48] sm:$0xff]
  %v37 = vld [vmem:[%s1 + $0x50] sm:$0xff]
  %v38 = vld [vmem:[%s1 + $0x58] sm:$0xff]
  %v39 = vld [vmem:[%s1 + $0x60] sm:$0xff]
  %v40 = vld [vmem:[%s1 + $0x68] sm:$0xff]
  %v41 = vld [vmem:[%s1 + $0x70] sm:$0xff]
  %v42 = vld [vmem:[%s1 + $0x78] sm:$0xff]
  %v43 = vld [vmem:[%s1 + $0x80] sm:$0xff]
  %v44 = vld [vmem:[%s1 + $0x88] sm:$0xff]
  %v45 = vld [vmem:[%s1 + $0x90] sm:$0xff]
  %v46 = vld [vmem:[%s1 + $0x98] sm:$0xff]
  %v47 = vld [vmem:[%s1 + $0xa0] sm:$0xff]
  %v48 = vld [vmem:[%s1 + $0xa8] sm:$0xff]
  %v49 = vld [vmem:[%s1 + $0xb0] sm:$0xff]
  %v50 = vld [vmem:[%s1 + $0xb8] sm:$0xff]
  %v51 = vld [vmem:[%s1 + $0xc0] sm:$0xff]
  %v52 = vld [vmem:[%s1 + $0xc8] sm:$0xff]
  %v53 = vld [vmem:[%s1 + $0xd0] sm:$0xff]
  %v54 = vld [vmem:[%s1 + $0xd8] sm:$0xff]
  %v55 = vld [vmem:[%s1 + $0xe0] sm:$0xff]
  %v56 = vld [vmem:[%s1 + $0xe8] sm:$0xff]
  %v57 = vld [vmem:[%s1 + $0xf0] sm:$0xff]
  %v58 = vld [vmem:[%s1 + $0xf8] sm:$0xff]
  %v91 = vunpack.c.l.b16 %v27
  %v92 = vunpack.c.h.b16 %v27
  %v93 = vunpack.c.l.b16 %v28
  %v94 = vunpack.c.h.b16 %v28
  %v95 = vunpack.c.l.b16 %v29
  %v96 = vunpack.c.h.b16 %v29
  %v97 = vunpack.c.l.b16 %v30
  %v98 = vunpack.c.h.b16 %v30
  %v99 = vunpack.c.l.b16 %v31
  %v100 = vunpack.c.h.b16 %v31
  %v101 = vunpack.c.l.b16 %v32
  %v102 = vunpack.c.h.b16 %v32
  %v103 = vunpack.c.l.b16 %v33
  %v104 = vunpack.c.h.b16 %v33
  %v105 = vunpack.c.l.b16 %v34
  %v106 = vunpack.c.h.b16 %v34
  %v107 = vunpack.c.l.b16 %v35
  %v108 = vunpack.c.h.b16 %v35
  %v109 = vunpack.c.l.b16 %v36
  %v110 = vunpack.c.h.b16 %v36
  %v111 = vunpack.c.l.b16 %v37
  %v112 = vunpack.c.h.b16 %v37
  %v113 = vunpack.c.l.b16 %v38
  %v114 = vunpack.c.h.b16 %v38
  %v115 = vunpack.c.l.b16 %v39
  %v116 = vunpack.c.h.b16 %v39
  %v117 = vunpack.c.l.b16 %v40
  %v118 = vunpack.c.h.b16 %v40
  %v119 = vunpack.c.l.b16 %v41
  %v120 = vunpack.c.h.b16 %v41
  %v121 = vunpack.c.l.b16 %v42
  %v122 = vunpack.c.h.b16 %v42
  %v123 = vunpack.c.l.b16 %v43
  %v124 = vunpack.c.h.b16 %v43
  %v125 = vunpack.c.l.b16 %v44
  %v126 = vunpack.c.h.b16 %v44
  %v127 = vunpack.c.l.b16 %v45
  %v128 = vunpack.c.h.b16 %v45
  %v129 = vunpack.c.l.b16 %v46
  %v130 = vunpack.c.h.b16 %v46
  %v131 = vunpack.c.l.b16 %v47
  %v132 = vunpack.c.h.b16 %v47
  %v133 = vunpack.c.l.b16 %v48
  %v134 = vunpack.c.h.b16 %v48
  %v135 = vunpack.c.l.b16 %v49
  %v136 = vunpack.c.h.b16 %v49
  %v137 = vunpack.c.l.b16 %v50
  %v138 = vunpack.c.h.b16 %v50
  %v139 = vunpack.c.l.b16 %v51
  %v140 = vunpack.c.h.b16 %v51
  %v141 = vunpack.c.l.b16 %v52
  %v142 = vunpack.c.h.b16 %v52
  %v143 = vunpack.c.l.b16 %v53
  %v144 = vunpack.c.h.b16 %v53
  %v145 = vunpack.c.l.b16 %v54
  %v146 = vunpack.c.h.b16 %v54
  %v147 = vunpack.c.l.b16 %v55
  %v148 = vunpack.c.h.b16 %v55
  %v149 = vunpack.c.l.b16 %v56
  %v150 = vunpack.c.h.b16 %v56
  %v151 = vunpack.c.l.b16 %v57
  %v152 = vunpack.c.h.b16 %v57
  %v153 = vunpack.c.l.b16 %v58
  %v154 = vunpack.c.h.b16 %v58
  %v155 = vpack.c.b16 %v95, %v91
  %v156 = vpack.c.b16 %v96, %v92
  %v157 = vpack.c.b16 %v97, %v93
  %v158 = vpack.c.b16 %v98, %v94
  %v159 = vpack.c.b16 %v103, %v99
  %v160 = vpack.c.b16 %v104, %v100
  %v161 = vpack.c.b16 %v105, %v101
  %v162 = vpack.c.b16 %v106, %v102
  %v163 = vpack.c.b16 %v111, %v107
  %v164 = vpack.c.b16 %v112, %v108
  %v165 = vpack.c.b16 %v113, %v109
  %v166 = vpack.c.b16 %v114, %v110
  %v167 = vpack.c.b16 %v119, %v115
  %v168 = vpack.c.b16 %v120, %v116
  %v169 = vpack.c.b16 %v121, %v117
  %v170 = vpack.c.b16 %v122, %v118
  %v171 = vpack.c.b16 %v127, %v123
  %v172 = vpack.c.b16 %v128, %v124
  %v173 = vpack.c.b16 %v129, %v125
  %v174 = vpack.c.b16 %v130, %v126
  %v175 = vpack.c.b16 %v135, %v131
  %v176 = vpack.c.b16 %v136, %v132
  %v177 = vpack.c.b16 %v137, %v133
  %v178 = vpack.c.b16 %v138, %v134
  %v179 = vpack.c.b16 %v143, %v139
  %v180 = vpack.c.b16 %v144, %v140
  %v181 = vpack.c.b16 %v145, %v141
  %v182 = vpack.c.b16 %v146, %v142
  %v183 = vpack.c.b16 %v151, %v147
  %v184 = vpack.c.b16 %v152, %v148
  %v185 = vpack.c.b16 %v153, %v149
  %v186 = vpack.c.b16 %v154, %v150
  %219 = vmatprep.subr.bf16.mxu0 %v184
  %220 = vmatpush1.bf16.msra.mxu0 %v183
  %221 = vmatprep.subr.bf16.mxu0 %v180
  %222 = vmatpush1.bf16.msra.mxu0 %v179
  %223 = vmatprep.subr.bf16.mxu0 %v176
  %224 = vmatpush1.bf16.msra.mxu0 %v175
  %225 = vmatprep.subr.bf16.mxu0 %v172
  %226 = vmatpush1.bf16.msra.mxu0 %v171
  %227 = vmatprep.subr.bf16.mxu0 %v168
  %228 = vmatpush1.bf16.msra.mxu0 %v167
  %229 = vmatprep.subr.bf16.mxu0 %v164
  %230 = vmatpush1.bf16.msra.mxu0 %v163
  %231 = vmatprep.subr.bf16.mxu0 %v160
  %232 = vmatpush1.bf16.msra.mxu0 %v159
  %233 = vmatprep.subr.bf16.mxu0 %v156
  %234 = vmatpush1.bf16.msra.mxu0 %v155
  %235 = vmatprep.subr.bf16.mxu0 0
  %236 = vmatpush2.bf16.msra.mxu0 0
  %237 = vmatprep.subr.bf16.mxu0 0
  %238 = vmatpush2.bf16.msra.mxu0 0
  %239 = vmatprep.subr.bf16.mxu0 0
  %240 = vmatpush2.bf16.msra.mxu0 0
  %241 = vmatprep.subr.bf16.mxu0 0
  %242 = vmatpush2.bf16.msra.mxu0 0
  %243 = vmatprep.subr.bf16.mxu0 0
  %244 = vmatpush2.bf16.msra.mxu0 0
  %245 = vmatprep.subr.bf16.mxu0 0
  %246 = vmatpush2.bf16.msra.mxu0 0
  %247 = vmatprep.subr.bf16.mxu0 0
  %248 = vmatpush2.bf16.msra.mxu0 0
  %249 = vmatprep.subr.bf16.mxu0 0
  %250 = vmatpush2.bf16.msra.mxu0 0
  %251 = vmatprep.mubr.bf16.mxu0 0
  %252 = vmatmul.mubr.bf16.gmra.mxu0 %v26
  %v253 = vpop.f32.mrf.mxu0
  %v254 = vadd.f32 0.0, %v253
  %v255 = vpop.f32.mrf.mxu0
  %v256 = vadd.f32 0.0, %v255
  %v257 = vpop.f32.mrf.mxu0
  %v258 = vpop.f32.mrf.mxu0
  %259 = vdwg.mxu0
  %260 = vmatprep.subr.bf16.mxu0 %v186
  %261 = vmatpush1.bf16.msra.mxu0 %v185
  %262 = vmatprep.subr.bf16.mxu0 %v182
  %263 = vmatpush1.bf16.msra.mxu0 %v181
  %264 = vmatprep.subr.bf16.mxu0 %v178
  %265 = vmatpush1.bf16.msra.mxu0 %v177
  %266 = vmatprep.subr.bf16.mxu0 %v174
  %267 = vmatpush1.bf16.msra.mxu0 %v173
  %268 = vmatprep.subr.bf16.mxu0 %v170
  %269 = vmatpush1.bf16.msra.mxu0 %v169
  %270 = vmatprep.subr.bf16.mxu0 %v166
  %271 = vmatpush1.bf16.msra.mxu0 %v165
  %272 = vmatprep.subr.bf16.mxu0 %v162
  %273 = vmatpush1.bf16.msra.mxu0 %v161
  %274 = vmatprep.subr.bf16.mxu0 %v158
  %275 = vmatpush1.bf16.msra.mxu0 %v157
  %276 = vmatprep.subr.bf16.mxu0 0
  %277 = vmatpush2.bf16.msra.mxu0 0
  %278 = vmatprep.subr.bf16.mxu0 0
  %279 = vmatpush2.bf16.msra.mxu0 0
  %280 = vmatprep.subr.bf16.mxu0 0
  %281 = vmatpush2.bf16.msra.mxu0 0
  %282 = vmatprep.subr.bf16.mxu0 0
  %283 = vmatpush2.bf16.msra.mxu0 0
  %284 = vmatprep.subr.bf16.mxu0 0
  %285 = vmatpush2.bf16.msra.mxu0 0
  %286 = vmatprep.subr.bf16.mxu0 0
  %287 = vmatpush2.bf16.msra.mxu0 0
  %288 = vmatprep.subr.bf16.mxu0 0
  %289 = vmatpush2.bf16.msra.mxu0 0
  %290 = vmatprep.subr.bf16.mxu0 0
  %291 = vmatpush2.bf16.msra.mxu0 0
  %292 = vmatprep.mubr.bf16.mxu0 0
  %293 = vmatmul.mubr.bf16.gmra.mxu0 %v26
  %v294 = vpop.f32.mrf.mxu0
  %v295 = vadd.f32 0.0, %v294
  %v296 = vpop.f32.mrf.mxu0
  %v297 = vadd.f32 0.0, %v296
  %v298 = vpop.f32.mrf.mxu0
  %v299 = vpop.f32.mrf.mxu0
  %300 = vdwg.mxu0
  %v305 = vcombine.low %v254, %v256
  %v306 = vcombine.low %v295, %v297
  %v308 = vunpack.c.l.s4 1983009808
  %v309 = vunpack.c.0.s8 %v308
  %v310 = vlaneseq
  %v311 = vshrl.u32 %v310, 7
  %v312 = vsub.s32 %v309, %v311
  %v313 = vrot.slane %v305, %v312
  %v315 = vunpack.c.l.s4 1983009808
  %v316 = vunpack.c.0.s8 %v315
  %v317 = vlaneseq
  %v318 = vshrl.u32 %v317, 7
  %v319 = vsub.s32 %v316, %v318
  %v320 = vrot.slane %v306, %v319
  %v321 = vcombine.low %v313, %v320
  %v323 = vadd.f32 %v25, %v321
  %v324 = vxor.u32 %v323, 2147483648
  %v325 = vmul.f32 %v324, 1.442695
  %v326 = vpow.pop %v325
  %v327 = vadd.f32 %v326, 1.0
  %v328 = vrcp.pop %v327
  %v329 = vmul.f32 1.0, %v328
  %v331 = vrot.slane %v323, 2
  %v333 = vxor.u32 %v331, 2147483648
  %v334 = vmul.f32 %v333, 1.442695
  %v335 = vpow.pop %v334
  %v336 = vadd.f32 %v335, 1.0
  %v337 = vrcp.pop %v336
  %v338 = vmul.f32 1.0, %v337
  %v339 = vrot.slane %v323, 4
  %v341 = vtanh.pop %v339
  %v342 = vrot.slane %v323, 6
  %v344 = vxor.u32 %v342, 2147483648
  %v345 = vmul.f32 %v344, 1.442695
  %v346 = vpow.pop %v345
  %v347 = vadd.f32 %v346, 1.0
  %v348 = vrcp.pop %v347
  %v349 = vmul.f32 1.0, %v348
  %v350 = vmul.f32 %v338, %v24
  %v351 = vmul.f32 %v329, %v341
  %v352 = vadd.f32 %v350, %v351
  %v353 = vtanh.pop %v352
  %v354 = vmul.f32 %v349, %v353
  %355 = vst [vmem:[%s3] sm:$0x3] %v354
  %s356 = scalar_lea.vmem %s0, 8
  %v357 = vld [vmem:[%s356] sm:$0xff]
  %v358 = vpack.c.bf16 %v354, %v354
  %v359 = vld [vmem:[%s1] sm:$0xff]
  %v360 = vld [vmem:[%s1 + $0x8] sm:$0xff]
  %v361 = vld [vmem:[%s1 + $0x10] sm:$0xff]
  %v362 = vld [vmem:[%s1 + $0x18] sm:$0xff]
  %v363 = vld [vmem:[%s1 + $0x20] sm:$0xff]
  %v364 = vld [vmem:[%s1 + $0x28] sm:$0xff]
  %v365 = vld [vmem:[%s1 + $0x30] sm:$0xff]
  %v366 = vld [vmem:[%s1 + $0x38] sm:$0xff]
  %v367 = vld [vmem:[%s1 + $0x40] sm:$0xff]
  %v368 = vld [vmem:[%s1 + $0x48] sm:$0xff]
  %v369 = vld [vmem:[%s1 + $0x50] sm:$0xff]
  %v370 = vld [vmem:[%s1 + $0x58] sm:$0xff]
  %v371 = vld [vmem:[%s1 + $0x60] sm:$0xff]
  %v372 = vld [vmem:[%s1 + $0x68] sm:$0xff]
  %v373 = vld [vmem:[%s1 + $0x70] sm:$0xff]
  %v374 = vld [vmem:[%s1 + $0x78] sm:$0xff]
  %v375 = vld [vmem:[%s1 + $0x80] sm:$0xff]
  %v376 = vld [vmem:[%s1 + $0x88] sm:$0xff]
  %v377 = vld [vmem:[%s1 + $0x90] sm:$0xff]
  %v378 = vld [vmem:[%s1 + $0x98] sm:$0xff]
  %v379 = vld [vmem:[%s1 + $0xa0] sm:$0xff]
  %v380 = vld [vmem:[%s1 + $0xa8] sm:$0xff]
  %v381 = vld [vmem:[%s1 + $0xb0] sm:$0xff]
  %v382 = vld [vmem:[%s1 + $0xb8] sm:$0xff]
  %v383 = vld [vmem:[%s1 + $0xc0] sm:$0xff]
  %v384 = vld [vmem:[%s1 + $0xc8] sm:$0xff]
  %v385 = vld [vmem:[%s1 + $0xd0] sm:$0xff]
  %v386 = vld [vmem:[%s1 + $0xd8] sm:$0xff]
  %v387 = vld [vmem:[%s1 + $0xe0] sm:$0xff]
  %v388 = vld [vmem:[%s1 + $0xe8] sm:$0xff]
  %v389 = vld [vmem:[%s1 + $0xf0] sm:$0xff]
  %v390 = vld [vmem:[%s1 + $0xf8] sm:$0xff]
  %v423 = vunpack.c.l.b16 %v359
  %v424 = vunpack.c.h.b16 %v359
  %v425 = vunpack.c.l.b16 %v360
  %v426 = vunpack.c.h.b16 %v360
  %v427 = vunpack.c.l.b16 %v361
  %v428 = vunpack.c.h.b16 %v361
  %v429 = vunpack.c.l.b16 %v362
  %v430 = vunpack.c.h.b16 %v362
  %v431 = vunpack.c.l.b16 %v363
  %v432 = vunpack.c.h.b16 %v363
  %v433 = vunpack.c.l.b16 %v364
  %v434 = vunpack.c.h.b16 %v364
  %v435 = vunpack.c.l.b16 %v365
  %v436 = vunpack.c.h.b16 %v365
  %v437 = vunpack.c.l.b16 %v366
  %v438 = vunpack.c.h.b16 %v366
  %v439 = vunpack.c.l.b16 %v367
  %v440 = vunpack.c.h.b16 %v367
  %v441 = vunpack.c.l.b16 %v368
  %v442 = vunpack.c.h.b16 %v368
  %v443 = vunpack.c.l.b16 %v369
  %v444 = vunpack.c.h.b16 %v369
  %v445 = vunpack.c.l.b16 %v370
  %v446 = vunpack.c.h.b16 %v370
  %v447 = vunpack.c.l.b16 %v371
  %v448 = vunpack.c.h.b16 %v371
  %v449 = vunpack.c.l.b16 %v372
  %v450 = vunpack.c.h.b16 %v372
  %v451 = vunpack.c.l.b16 %v373
  %v452 = vunpack.c.h.b16 %v373
  %v453 = vunpack.c.l.b16 %v374
  %v454 = vunpack.c.h.b16 %v374
  %v455 = vunpack.c.l.b16 %v375
  %v456 = vunpack.c.h.b16 %v375
  %v457 = vunpack.c.l.b16 %v376
  %v458 = vunpack.c.h.b16 %v376
  %v459 = vunpack.c.l.b16 %v377
  %v460 = vunpack.c.h.b16 %v377
  %v461 = vunpack.c.l.b16 %v378
  %v462 = vunpack.c.h.b16 %v378
  %v463 = vunpack.c.l.b16 %v379
  %v464 = vunpack.c.h.b16 %v379
  %v465 = vunpack.c.l.b16 %v380
  %v466 = vunpack.c.h.b16 %v380
  %v467 = vunpack.c.l.b16 %v381
  %v468 = vunpack.c.h.b16 %v381
  %v469 = vunpack.c.l.b16 %v382
  %v470 = vunpack.c.h.b16 %v382
  %v471 = vunpack.c.l.b16 %v383
  %v472 = vunpack.c.h.b16 %v383
  %v473 = vunpack.c.l.b16 %v384
  %v474 = vunpack.c.h.b16 %v384
  %v475 = vunpack.c.l.b16 %v385
  %v476 = vunpack.c.h.b16 %v385
  %v477 = vunpack.c.l.b16 %v386
  %v478 = vunpack.c.h.b16 %v386
  %v479 = vunpack.c.l.b16 %v387
  %v480 = vunpack.c.h.b16 %v387
  %v481 = vunpack.c.l.b16 %v388
  %v482 = vunpack.c.h.b16 %v388
  %v483 = vunpack.c.l.b16 %v389
  %v484 = vunpack.c.h.b16 %v389
  %v485 = vunpack.c.l.b16 %v390
  %v486 = vunpack.c.h.b16 %v390
  %v487 = vpack.c.b16 %v427, %v423
  %v488 = vpack.c.b16 %v428, %v424
  %v489 = vpack.c.b16 %v429, %v425
  %v490 = vpack.c.b16 %v430, %v426
  %v491 = vpack.c.b16 %v435, %v431
  %v492 = vpack.c.b16 %v436, %v432
  %v493 = vpack.c.b16 %v437, %v433
  %v494 = vpack.c.b16 %v438, %v434
  %v495 = vpack.c.b16 %v443, %v439
  %v496 = vpack.c.b16 %v444, %v440
  %v497 = vpack.c.b16 %v445, %v441
  %v498 = vpack.c.b16 %v446, %v442
  %v499 = vpack.c.b16 %v451, %v447
  %v500 = vpack.c.b16 %v452, %v448
  %v501 = vpack.c.b16 %v453, %v449
  %v502 = vpack.c.b16 %v454, %v450
  %v503 = vpack.c.b16 %v459, %v455
  %v504 = vpack.c.b16 %v460, %v456
  %v505 = vpack.c.b16 %v461, %v457
  %v506 = vpack.c.b16 %v462, %v458
  %v507 = vpack.c.b16 %v467, %v463
  %v508 = vpack.c.b16 %v468, %v464
  %v509 = vpack.c.b16 %v469, %v465
  %v510 = vpack.c.b16 %v470, %v466
  %v511 = vpack.c.b16 %v475, %v471
  %v512 = vpack.c.b16 %v476, %v472
  %v513 = vpack.c.b16 %v477, %v473
  %v514 = vpack.c.b16 %v478, %v474
  %v515 = vpack.c.b16 %v483, %v479
  %v516 = vpack.c.b16 %v484, %v480
  %v517 = vpack.c.b16 %v485, %v481
  %v518 = vpack.c.b16 %v486, %v482
  %551 = vmatprep.subr.bf16.mxu0 %v516
  %552 = vmatpush1.bf16.msra.mxu0 %v515
  %553 = vmatprep.subr.bf16.mxu0 %v512
  %554 = vmatpush1.bf16.msra.mxu0 %v511
  %555 = vmatprep.subr.bf16.mxu0 %v508
  %556 = vmatpush1.bf16.msra.mxu0 %v507
  %557 = vmatprep.subr.bf16.mxu0 %v504
  %558 = vmatpush1.bf16.msra.mxu0 %v503
  %559 = vmatprep.subr.bf16.mxu0 %v500
  %560 = vmatpush1.bf16.msra.mxu0 %v499
  %561 = vmatprep.subr.bf16.mxu0 %v496
  %562 = vmatpush1.bf16.msra.mxu0 %v495
  %563 = vmatprep.subr.bf16.mxu0 %v492
  %564 = vmatpush1.bf16.msra.mxu0 %v491
  %565 = vmatprep.subr.bf16.mxu0 %v488
  %566 = vmatpush1.bf16.msra.mxu0 %v487
  %567 = vmatprep.subr.bf16.mxu0 0
  %568 = vmatpush2.bf16.msra.mxu0 0
  %569 = vmatprep.subr.bf16.mxu0 0
  %570 = vmatpush2.bf16.msra.mxu0 0
  %571 = vmatprep.subr.bf16.mxu0 0
  %572 = vmatpush2.bf16.msra.mxu0 0
  %573 = vmatprep.subr.bf16.mxu0 0
  %574 = vmatpush2.bf16.msra.mxu0 0
  %575 = vmatprep.subr.bf16.mxu0 0
  %576 = vmatpush2.bf16.msra.mxu0 0
  %577 = vmatprep.subr.bf16.mxu0 0
  %578 = vmatpush2.bf16.msra.mxu0 0
  %579 = vmatprep.subr.bf16.mxu0 0
  %580 = vmatpush2.bf16.msra.mxu0 0
  %581 = vmatprep.subr.bf16.mxu0 0
  %582 = vmatpush2.bf16.msra.mxu0 0
  %583 = vmatprep.mubr.bf16.mxu0 0
  %584 = vmatmul.mubr.bf16.gmra.mxu0 %v358
  %v585 = vpop.f32.mrf.mxu0
  %v586 = vadd.f32 0.0, %v585
  %v587 = vpop.f32.mrf.mxu0
  %v588 = vadd.f32 0.0, %v587
  %v589 = vpop.f32.mrf.mxu0
  %v590 = vpop.f32.mrf.mxu0
  %591 = vdwg.mxu0
  %592 = vmatprep.subr.bf16.mxu0 %v518
  %593 = vmatpush1.bf16.msra.mxu0 %v517
  %594 = vmatprep.subr.bf16.mxu0 %v514
  %595 = vmatpush1.bf16.msra.mxu0 %v513
  %596 = vmatprep.subr.bf16.mxu0 %v510
  %597 = vmatpush1.bf16.msra.mxu0 %v509
  %598 = vmatprep.subr.bf16.mxu0 %v506
  %599 = vmatpush1.bf16.msra.mxu0 %v505
  %600 = vmatprep.subr.bf16.mxu0 %v502
  %601 = vmatpush1.bf16.msra.mxu0 %v501
  %602 = vmatprep.subr.bf16.mxu0 %v498
  %603 = vmatpush1.bf16.msra.mxu0 %v497
  %604 = vmatprep.subr.bf16.mxu0 %v494
  %605 = vmatpush1.bf16.msra.mxu0 %v493
  %606 = vmatprep.subr.bf16.mxu0 %v490
  %607 = vmatpush1.bf16.msra.mxu0 %v489
  %608 = vmatprep.subr.bf16.mxu0 0
  %609 = vmatpush2.bf16.msra.mxu0 0
  %610 = vmatprep.subr.bf16.mxu0 0
  %611 = vmatpush2.bf16.msra.mxu0 0
  %612 = vmatprep.subr.bf16.mxu0 0
  %613 = vmatpush2.bf16.msra.mxu0 0
  %614 = vmatprep.subr.bf16.mxu0 0
  %615 = vmatpush2.bf16.msra.mxu0 0
  %616 = vmatprep.subr.bf16.mxu0 0
  %617 = vmatpush2.bf16.msra.mxu0 0
  %618 = vmatprep.subr.bf16.mxu0 0
  %619 = vmatpush2.bf16.msra.mxu0 0
  %620 = vmatprep.subr.bf16.mxu0 0
  %621 = vmatpush2.bf16.msra.mxu0 0
  %622 = vmatprep.subr.bf16.mxu0 0
  %623 = vmatpush2.bf16.msra.mxu0 0
  %624 = vmatprep.mubr.bf16.mxu0 0
  %625 = vmatmul.mubr.bf16.gmra.mxu0 %v358
  %v626 = vpop.f32.mrf.mxu0
  %v627 = vadd.f32 0.0, %v626
  %v628 = vpop.f32.mrf.mxu0
  %v629 = vadd.f32 0.0, %v628
  %v630 = vpop.f32.mrf.mxu0
  %v631 = vpop.f32.mrf.mxu0
  %632 = vdwg.mxu0
  %v637 = vcombine.low %v586, %v588
  %v638 = vcombine.low %v627, %v629
  %v640 = vunpack.c.l.s4 1983009808
  %v641 = vunpack.c.0.s8 %v640
  %v642 = vlaneseq
  %v643 = vshrl.u32 %v642, 7
  %v644 = vsub.s32 %v641, %v643
  %v645 = vrot.slane %v637, %v644
  %v647 = vunpack.c.l.s4 1983009808
  %v648 = vunpack.c.0.s8 %v647
  %v649 = vlaneseq
  %v650 = vshrl.u32 %v649, 7
  %v651 = vsub.s32 %v648, %v650
  %v652 = vrot.slane %v638, %v651
  %v653 = vcombine.low %v645, %v652
  %v655 = vadd.f32 %v357, %v653
  %v656 = vxor.u32 %v655, 2147483648
  %v657 = vmul.f32 %v656, 1.442695
  %v658 = vpow.pop %v657
  %v659 = vadd.f32 %v658, 1.0
  %v660 = vrcp.pop %v659
  %v661 = vmul.f32 1.0, %v660
  %v663 = vrot.slane %v655, 2
  %v665 = vxor.u32 %v663, 2147483648
  %v666 = vmul.f32 %v665, 1.442695
  %v667 = vpow.pop %v666
  %v668 = vadd.f32 %v667, 1.0
  %v669 = vrcp.pop %v668
  %v670 = vmul.f32 1.0, %v669
  %v671 = vrot.slane %v655, 4
  %v673 = vtanh.pop %v671
  %v674 = vrot.slane %v655, 6
  %v676 = vxor.u32 %v674, 2147483648
  %v677 = vmul.f32 %v676, 1.442695
  %v678 = vpow.pop %v677
  %v679 = vadd.f32 %v678, 1.0
  %v680 = vrcp.pop %v679
  %v681 = vmul.f32 1.0, %v680
  %v682 = vmul.f32 %v670, %v352
  %v683 = vmul.f32 %v661, %v673
  %v684 = vadd.f32 %v682, %v683
  %v685 = vtanh.pop %v684
  %v686 = vmul.f32 %v681, %v685
  %s687 = scalar_lea.vmem %s3, 2
  %688 = vst [vmem:[%s687] sm:$0x3] %v686
  %s689 = scalar_lea.vmem %s0, 16
  %v690 = vld [vmem:[%s689] sm:$0xff]
  %v691 = vpack.c.bf16 %v686, %v686
  %v692 = vld [vmem:[%s1] sm:$0xff]
  %v693 = vld [vmem:[%s1 + $0x8] sm:$0xff]
  %v694 = vld [vmem:[%s1 + $0x10] sm:$0xff]
  %v695 = vld [vmem:[%s1 + $0x18] sm:$0xff]
  %v696 = vld [vmem:[%s1 + $0x20] sm:$0xff]
  %v697 = vld [vmem:[%s1 + $0x28] sm:$0xff]
  %v698 = vld [vmem:[%s1 + $0x30] sm:$0xff]
  %v699 = vld [vmem:[%s1 + $0x38] sm:$0xff]
  %v700 = vld [vmem:[%s1 + $0x40] sm:$0xff]
  %v701 = vld [vmem:[%s1 + $0x48] sm:$0xff]
  %v702 = vld [vmem:[%s1 + $0x50] sm:$0xff]
  %v703 = vld [vmem:[%s1 + $0x58] sm:$0xff]
  %v704 = vld [vmem:[%s1 + $0x60] sm:$0xff]
  %v705 = vld [vmem:[%s1 + $0x68] sm:$0xff]
  %v706 = vld [vmem:[%s1 + $0x70] sm:$0xff]
  %v707 = vld [vmem:[%s1 + $0x78] sm:$0xff]
  %v708 = vld [vmem:[%s1 + $0x80] sm:$0xff]
  %v709 = vld [vmem:[%s1 + $0x88] sm:$0xff]
  %v710 = vld [vmem:[%s1 + $0x90] sm:$0xff]
  %v711 = vld [vmem:[%s1 + $0x98] sm:$0xff]
  %v712 = vld [vmem:[%s1 + $0xa0] sm:$0xff]
  %v713 = vld [vmem:[%s1 + $0xa8] sm:$0xff]
  %v714 = vld [vmem:[%s1 + $0xb0] sm:$0xff]
  %v715 = vld [vmem:[%s1 + $0xb8] sm:$0xff]
  %v716 = vld [vmem:[%s1 + $0xc0] sm:$0xff]
  %v717 = vld [vmem:[%s1 + $0xc8] sm:$0xff]
  %v718 = vld [vmem:[%s1 + $0xd0] sm:$0xff]
  %v719 = vld [vmem:[%s1 + $0xd8] sm:$0xff]
  %v720 = vld [vmem:[%s1 + $0xe0] sm:$0xff]
  %v721 = vld [vmem:[%s1 + $0xe8] sm:$0xff]
  %v722 = vld [vmem:[%s1 + $0xf0] sm:$0xff]
  %v723 = vld [vmem:[%s1 + $0xf8] sm:$0xff]
  %v756 = vunpack.c.l.b16 %v692
  %v757 = vunpack.c.h.b16 %v692
  %v758 = vunpack.c.l.b16 %v693
  %v759 = vunpack.c.h.b16 %v693
  %v760 = vunpack.c.l.b16 %v694
  %v761 = vunpack.c.h.b16 %v694
  %v762 = vunpack.c.l.b16 %v695
  %v763 = vunpack.c.h.b16 %v695
  %v764 = vunpack.c.l.b16 %v696
  %v765 = vunpack.c.h.b16 %v696
  %v766 = vunpack.c.l.b16 %v697
  %v767 = vunpack.c.h.b16 %v697
  %v768 = vunpack.c.l.b16 %v698
  %v769 = vunpack.c.h.b16 %v698
  %v770 = vunpack.c.l.b16 %v699
  %v771 = vunpack.c.h.b16 %v699
  %v772 = vunpack.c.l.b16 %v700
  %v773 = vunpack.c.h.b16 %v700
  %v774 = vunpack.c.l.b16 %v701
  %v775 = vunpack.c.h.b16 %v701
  %v776 = vunpack.c.l.b16 %v702
  %v777 = vunpack.c.h.b16 %v702
  %v778 = vunpack.c.l.b16 %v703
  %v779 = vunpack.c.h.b16 %v703
  %v780 = vunpack.c.l.b16 %v704
  %v781 = vunpack.c.h.b16 %v704
  %v782 = vunpack.c.l.b16 %v705
  %v783 = vunpack.c.h.b16 %v705
  %v784 = vunpack.c.l.b16 %v706
  %v785 = vunpack.c.h.b16 %v706
  %v786 = vunpack.c.l.b16 %v707
  %v787 = vunpack.c.h.b16 %v707
  %v788 = vunpack.c.l.b16 %v708
  %v789 = vunpack.c.h.b16 %v708
  %v790 = vunpack.c.l.b16 %v709
  %v791 = vunpack.c.h.b16 %v709
  %v792 = vunpack.c.l.b16 %v710
  %v793 = vunpack.c.h.b16 %v710
  %v794 = vunpack.c.l.b16 %v711
  %v795 = vunpack.c.h.b16 %v711
  %v796 = vunpack.c.l.b16 %v712
  %v797 = vunpack.c.h.b16 %v712
  %v798 = vunpack.c.l.b16 %v713
  %v799 = vunpack.c.h.b16 %v713
  %v800 = vunpack.c.l.b16 %v714
  %v801 = vunpack.c.h.b16 %v714
  %v802 = vunpack.c.l.b16 %v715
  %v803 = vunpack.c.h.b16 %v715
  %v804 = vunpack.c.l.b16 %v716
  %v805 = vunpack.c.h.b16 %v716
  %v806 = vunpack.c.l.b16 %v717
  %v807 = vunpack.c.h.b16 %v717
  %v808 = vunpack.c.l.b16 %v718
  %v809 = vunpack.c.h.b16 %v718
  %v810 = vunpack.c.l.b16 %v719
  %v811 = vunpack.c.h.b16 %v719
  %v812 = vunpack.c.l.b16 %v720
  %v813 = vunpack.c.h.b16 %v720
  %v814 = vunpack.c.l.b16 %v721
  %v815 = vunpack.c.h.b16 %v721
  %v816 = vunpack.c.l.b16 %v722
  %v817 = vunpack.c.h.b16 %v722
  %v818 = vunpack.c.l.b16 %v723
  %v819 = vunpack.c.h.b16 %v723
  %v820 = vpack.c.b16 %v760, %v756
  %v821 = vpack.c.b16 %v761, %v757
  %v822 = vpack.c.b16 %v762, %v758
  %v823 = vpack.c.b16 %v763, %v759
  %v824 = vpack.c.b16 %v768, %v764
  %v825 = vpack.c.b16 %v769, %v765
  %v826 = vpack.c.b16 %v770, %v766
  %v827 = vpack.c.b16 %v771, %v767
  %v828 = vpack.c.b16 %v776, %v772
  %v829 = vpack.c.b16 %v777, %v773
  %v830 = vpack.c.b16 %v778, %v774
  %v831 = vpack.c.b16 %v779, %v775
  %v832 = vpack.c.b16 %v784, %v780
  %v833 = vpack.c.b16 %v785, %v781
  %v834 = vpack.c.b16 %v786, %v782
  %v835 = vpack.c.b16 %v787, %v783
  %v836 = vpack.c.b16 %v792, %v788
  %v837 = vpack.c.b16 %v793, %v789
  %v838 = vpack.c.b16 %v794, %v790
  %v839 = vpack.c.b16 %v795, %v791
  %v840 = vpack.c.b16 %v800, %v796
  %v841 = vpack.c.b16 %v801, %v797
  %v842 = vpack.c.b16 %v802, %v798
  %v843 = vpack.c.b16 %v803, %v799
  %v844 = vpack.c.b16 %v808, %v804
  %v845 = vpack.c.b16 %v809, %v805
  %v846 = vpack.c.b16 %v810, %v806
  %v847 = vpack.c.b16 %v811, %v807
  %v848 = vpack.c.b16 %v816, %v812
  %v849 = vpack.c.b16 %v817, %v813
  %v850 = vpack.c.b16 %v818, %v814
  %v851 = vpack.c.b16 %v819, %v815
  %884 = vmatprep.subr.bf16.mxu0 %v849
  %885 = vmatpush1.bf16.msra.mxu0 %v848
  %886 = vmatprep.subr.bf16.mxu0 %v845
  %887 = vmatpush1.bf16.msra.mxu0 %v844
  %888 = vmatprep.subr.bf16.mxu0 %v841
  %889 = vmatpush1.bf16.msra.mxu0 %v840
  %890 = vmatprep.subr.bf16.mxu0 %v837
  %891 = vmatpush1.bf16.msra.mxu0 %v836
  %892 = vmatprep.subr.bf16.mxu0 %v833
  %893 = vmatpush1.bf16.msra.mxu0 %v832
  %894 = vmatprep.subr.bf16.mxu0 %v829
  %895 = vmatpush1.bf16.msra.mxu0 %v828
  %896 = vmatprep.subr.bf16.mxu0 %v825
  %897 = vmatpush1.bf16.msra.mxu0 %v824
  %898 = vmatprep.subr.bf16.mxu0 %v821
  %899 = vmatpush1.bf16.msra.mxu0 %v820
  %900 = vmatprep.subr.bf16.mxu0 0
  %901 = vmatpush2.bf16.msra.mxu0 0
  %902 = vmatprep.subr.bf16.mxu0 0
  %903 = vmatpush2.bf16.msra.mxu0 0
  %904 = vmatprep.subr.bf16.mxu0 0
  %905 = vmatpush2.bf16.msra.mxu0 0
  %906 = vmatprep.subr.bf16.mxu0 0
  %907 = vmatpush2.bf16.msra.mxu0 0
  %908 = vmatprep.subr.bf16.mxu0 0
  %909 = vmatpush2.bf16.msra.mxu0 0
  %910 = vmatprep.subr.bf16.mxu0 0
  %911 = vmatpush2.bf16.msra.mxu0 0
  %912 = vmatprep.subr.bf16.mxu0 0
  %913 = vmatpush2.bf16.msra.mxu0 0
  %914 = vmatprep.subr.bf16.mxu0 0
  %915 = vmatpush2.bf16.msra.mxu0 0
  %916 = vmatprep.mubr.bf16.mxu0 0
  %917 = vmatmul.mubr.bf16.gmra.mxu0 %v691
  %v918 = vpop.f32.mrf.mxu0
  %v919 = vadd.f32 0.0, %v918
  %v920 = vpop.f32.mrf.mxu0
  %v921 = vadd.f32 0.0, %v920
  %v922 = vpop.f32.mrf.mxu0
  %v923 = vpop.f32.mrf.mxu0
  %924 = vdwg.mxu0
  %925 = vmatprep.subr.bf16.mxu0 %v851
  %926 = vmatpush1.bf16.msra.mxu0 %v850
  %927 = vmatprep.subr.bf16.mxu0 %v847
  %928 = vmatpush1.bf16.msra.mxu0 %v846
  %929 = vmatprep.subr.bf16.mxu0 %v843
  %930 = vmatpush1.bf16.msra.mxu0 %v842
  %931 = vmatprep.subr.bf16.mxu0 %v839
  %932 = vmatpush1.bf16.msra.mxu0 %v838
  %933 = vmatprep.subr.bf16.mxu0 %v835
  %934 = vmatpush1.bf16.msra.mxu0 %v834
  %935 = vmatprep.subr.bf16.mxu0 %v831
  %936 = vmatpush1.bf16.msra.mxu0 %v830
  %937 = vmatprep.subr.bf16.mxu0 %v827
  %938 = vmatpush1.bf16.msra.mxu0 %v826
  %939 = vmatprep.subr.bf16.mxu0 %v823
  %940 = vmatpush1.bf16.msra.mxu0 %v822
  %941 = vmatprep.subr.bf16.mxu0 0
  %942 = vmatpush2.bf16.msra.mxu0 0
  %943 = vmatprep.subr.bf16.mxu0 0
  %944 = vmatpush2.bf16.msra.mxu0 0
  %945 = vmatprep.subr.bf16.mxu0 0
  %946 = vmatpush2.bf16.msra.mxu0 0
  %947 = vmatprep.subr.bf16.mxu0 0
  %948 = vmatpush2.bf16.msra.mxu0 0
  %949 = vmatprep.subr.bf16.mxu0 0
  %950 = vmatpush2.bf16.msra.mxu0 0
  %951 = vmatprep.subr.bf16.mxu0 0
  %952 = vmatpush2.bf16.msra.mxu0 0
  %953 = vmatprep.subr.bf16.mxu0 0
  %954 = vmatpush2.bf16.msra.mxu0 0
  %955 = vmatprep.subr.bf16.mxu0 0
  %956 = vmatpush2.bf16.msra.mxu0 0
  %957 = vmatprep.mubr.bf16.mxu0 0
  %958 = vmatmul.mubr.bf16.gmra.mxu0 %v691
  %v959 = vpop.f32.mrf.mxu0
  %v960 = vadd.f32 0.0, %v959
  %v961 = vpop.f32.mrf.mxu0
  %v962 = vadd.f32 0.0, %v961
  %v963 = vpop.f32.mrf.mxu0
  %v964 = vpop.f32.mrf.mxu0
  %965 = vdwg.mxu0
  %v970 = vcombine.low %v919, %v921
  %v971 = vcombine.low %v960, %v962
  %v973 = vunpack.c.l.s4 1983009808
  %v974 = vunpack.c.0.s8 %v973
  %v975 = vlaneseq
  %v976 = vshrl.u32 %v975, 7
  %v977 = vsub.s32 %v974, %v976
  %v978 = vrot.slane %v970, %v977
  %v980 = vunpack.c.l.s4 1983009808
  %v981 = vunpack.c.0.s8 %v980
  %v982 = vlaneseq
  %v983 = vshrl.u32 %v982, 7
  %v984 = vsub.s32 %v981, %v983
  %v985 = vrot.slane %v971, %v984
  %v986 = vcombine.low %v978, %v985
  %v988 = vadd.f32 %v690, %v986
  %v989 = vxor.u32 %v988, 2147483648
  %v990 = vmul.f32 %v989, 1.442695
  %v991 = vpow.pop %v990
  %v992 = vadd.f32 %v991, 1.0
  %v993 = vrcp.pop %v992
  %v994 = vmul.f32 1.0, %v993
  %v996 = vrot.slane %v988, 2
  %v998 = vxor.u32 %v996, 2147483648
  %v999 = vmul.f32 %v998, 1.442695
  %v1000 = vpow.pop %v999
  %v1001 = vadd.f32 %v1000, 1.0
  %v1002 = vrcp.pop %v1001
  %v1003 = vmul.f32 1.0, %v1002
  %v1004 = vrot.slane %v988, 4
  %v1006 = vtanh.pop %v1004
  %v1007 = vrot.slane %v988, 6
  %v1009 = vxor.u32 %v1007, 2147483648
  %v1010 = vmul.f32 %v1009, 1.442695
  %v1011 = vpow.pop %v1010
  %v1012 = vadd.f32 %v1011, 1.0
  %v1013 = vrcp.pop %v1012
  %v1014 = vmul.f32 1.0, %v1013
  %v1015 = vmul.f32 %v1003, %v684
  %v1016 = vmul.f32 %v994, %v1006
  %v1017 = vadd.f32 %v1015, %v1016
  %v1018 = vtanh.pop %v1017
  %v1019 = vmul.f32 %v1014, %v1018
  %s1020 = scalar_lea.vmem %s3, 4
  %1021 = vst [vmem:[%s1020] sm:$0x3] %v1019
  %s1022 = scalar_lea.vmem %s0, 24
  %v1023 = vld [vmem:[%s1022] sm:$0xff]
  %v1024 = vpack.c.bf16 %v1019, %v1019
  %v1025 = vld [vmem:[%s1] sm:$0xff]
  %v1026 = vld [vmem:[%s1 + $0x8] sm:$0xff]
  %v1027 = vld [vmem:[%s1 + $0x10] sm:$0xff]
  %v1028 = vld [vmem:[%s1 + $0x18] sm:$0xff]
  %v1029 = vld [vmem:[%s1 + $0x20] sm:$0xff]
  %v1030 = vld [vmem:[%s1 + $0x28] sm:$0xff]
  %v1031 = vld [vmem:[%s1 + $0x30] sm:$0xff]
  %v1032 = vld [vmem:[%s1 + $0x38] sm:$0xff]
  %v1033 = vld [vmem:[%s1 + $0x40] sm:$0xff]
  %v1034 = vld [vmem:[%s1 + $0x48] sm:$0xff]
  %v1035 = vld [vmem:[%s1 + $0x50] sm:$0xff]
  %v1036 = vld [vmem:[%s1 + $0x58] sm:$0xff]
  %v1037 = vld [vmem:[%s1 + $0x60] sm:$0xff]
  %v1038 = vld [vmem:[%s1 + $0x68] sm:$0xff]
  %v1039 = vld [vmem:[%s1 + $0x70] sm:$0xff]
  %v1040 = vld [vmem:[%s1 + $0x78] sm:$0xff]
  %v1041 = vld [vmem:[%s1 + $0x80] sm:$0xff]
  %v1042 = vld [vmem:[%s1 + $0x88] sm:$0xff]
  %v1043 = vld [vmem:[%s1 + $0x90] sm:$0xff]
  %v1044 = vld [vmem:[%s1 + $0x98] sm:$0xff]
  %v1045 = vld [vmem:[%s1 + $0xa0] sm:$0xff]
  %v1046 = vld [vmem:[%s1 + $0xa8] sm:$0xff]
  %v1047 = vld [vmem:[%s1 + $0xb0] sm:$0xff]
  %v1048 = vld [vmem:[%s1 + $0xb8] sm:$0xff]
  %v1049 = vld [vmem:[%s1 + $0xc0] sm:$0xff]
  %v1050 = vld [vmem:[%s1 + $0xc8] sm:$0xff]
  %v1051 = vld [vmem:[%s1 + $0xd0] sm:$0xff]
  %v1052 = vld [vmem:[%s1 + $0xd8] sm:$0xff]
  %v1053 = vld [vmem:[%s1 + $0xe0] sm:$0xff]
  %v1054 = vld [vmem:[%s1 + $0xe8] sm:$0xff]
  %v1055 = vld [vmem:[%s1 + $0xf0] sm:$0xff]
  %v1056 = vld [vmem:[%s1 + $0xf8] sm:$0xff]
  %v1089 = vunpack.c.l.b16 %v1025
  %v1090 = vunpack.c.h.b16 %v1025
  %v1091 = vunpack.c.l.b16 %v1026
  %v1092 = vunpack.c.h.b16 %v1026
  %v1093 = vunpack.c.l.b16 %v1027
  %v1094 = vunpack.c.h.b16 %v1027
  %v1095 = vunpack.c.l.b16 %v1028
  %v1096 = vunpack.c.h.b16 %v1028
  %v1097 = vunpack.c.l.b16 %v1029
  %v1098 = vunpack.c.h.b16 %v1029
  %v1099 = vunpack.c.l.b16 %v1030
  %v1100 = vunpack.c.h.b16 %v1030
  %v1101 = vunpack.c.l.b16 %v1031
  %v1102 = vunpack.c.h.b16 %v1031
  %v1103 = vunpack.c.l.b16 %v1032
  %v1104 = vunpack.c.h.b16 %v1032
  %v1105 = vunpack.c.l.b16 %v1033
  %v1106 = vunpack.c.h.b16 %v1033
  %v1107 = vunpack.c.l.b16 %v1034
  %v1108 = vunpack.c.h.b16 %v1034
  %v1109 = vunpack.c.l.b16 %v1035
  %v1110 = vunpack.c.h.b16 %v1035
  %v1111 = vunpack.c.l.b16 %v1036
  %v1112 = vunpack.c.h.b16 %v1036
  %v1113 = vunpack.c.l.b16 %v1037
  %v1114 = vunpack.c.h.b16 %v1037
  %v1115 = vunpack.c.l.b16 %v1038
  %v1116 = vunpack.c.h.b16 %v1038
  %v1117 = vunpack.c.l.b16 %v1039
  %v1118 = vunpack.c.h.b16 %v1039
  %v1119 = vunpack.c.l.b16 %v1040
  %v1120 = vunpack.c.h.b16 %v1040
  %v1121 = vunpack.c.l.b16 %v1041
  %v1122 = vunpack.c.h.b16 %v1041
  %v1123 = vunpack.c.l.b16 %v1042
  %v1124 = vunpack.c.h.b16 %v1042
  %v1125 = vunpack.c.l.b16 %v1043
  %v1126 = vunpack.c.h.b16 %v1043
  %v1127 = vunpack.c.l.b16 %v1044
  %v1128 = vunpack.c.h.b16 %v1044
  %v1129 = vunpack.c.l.b16 %v1045
  %v1130 = vunpack.c.h.b16 %v1045
  %v1131 = vunpack.c.l.b16 %v1046
  %v1132 = vunpack.c.h.b16 %v1046
  %v1133 = vunpack.c.l.b16 %v1047
  %v1134 = vunpack.c.h.b16 %v1047
  %v1135 = vunpack.c.l.b16 %v1048
  %v1136 = vunpack.c.h.b16 %v1048
  %v1137 = vunpack.c.l.b16 %v1049
  %v1138 = vunpack.c.h.b16 %v1049
  %v1139 = vunpack.c.l.b16 %v1050
  %v1140 = vunpack.c.h.b16 %v1050
  %v1141 = vunpack.c.l.b16 %v1051
  %v1142 = vunpack.c.h.b16 %v1051
  %v1143 = vunpack.c.l.b16 %v1052
  %v1144 = vunpack.c.h.b16 %v1052
  %v1145 = vunpack.c.l.b16 %v1053
  %v1146 = vunpack.c.h.b16 %v1053
  %v1147 = vunpack.c.l.b16 %v1054
  %v1148 = vunpack.c.h.b16 %v1054
  %v1149 = vunpack.c.l.b16 %v1055
  %v1150 = vunpack.c.h.b16 %v1055
  %v1151 = vunpack.c.l.b16 %v1056
  %v1152 = vunpack.c.h.b16 %v1056
  %v1153 = vpack.c.b16 %v1093, %v1089
  %v1154 = vpack.c.b16 %v1094, %v1090
  %v1155 = vpack.c.b16 %v1095, %v1091
  %v1156 = vpack.c.b16 %v1096, %v1092
  %v1157 = vpack.c.b16 %v1101, %v1097
  %v1158 = vpack.c.b16 %v1102, %v1098
  %v1159 = vpack.c.b16 %v1103, %v1099
  %v1160 = vpack.c.b16 %v1104, %v1100
  %v1161 = vpack.c.b16 %v1109, %v1105
  %v1162 = vpack.c.b16 %v1110, %v1106
  %v1163 = vpack.c.b16 %v1111, %v1107
  %v1164 = vpack.c.b16 %v1112, %v1108
  %v1165 = vpack.c.b16 %v1117, %v1113
  %v1166 = vpack.c.b16 %v1118, %v1114
  %v1167 = vpack.c.b16 %v1119, %v1115
  %v1168 = vpack.c.b16 %v1120, %v1116
  %v1169 = vpack.c.b16 %v1125, %v1121
  %v1170 = vpack.c.b16 %v1126, %v1122
  %v1171 = vpack.c.b16 %v1127, %v1123
  %v1172 = vpack.c.b16 %v1128, %v1124
  %v1173 = vpack.c.b16 %v1133, %v1129
  %v1174 = vpack.c.b16 %v1134, %v1130
  %v1175 = vpack.c.b16 %v1135, %v1131
  %v1176 = vpack.c.b16 %v1136, %v1132
  %v1177 = vpack.c.b16 %v1141, %v1137
  %v1178 = vpack.c.b16 %v1142, %v1138
  %v1179 = vpack.c.b16 %v1143, %v1139
  %v1180 = vpack.c.b16 %v1144, %v1140
  %v1181 = vpack.c.b16 %v1149, %v1145
  %v1182 = vpack.c.b16 %v1150, %v1146
  %v1183 = vpack.c.b16 %v1151, %v1147
  %v1184 = vpack.c.b16 %v1152, %v1148
  %1217 = vmatprep.subr.bf16.mxu0 %v1182
  %1218 = vmatpush1.bf16.msra.mxu0 %v1181
  %1219 = vmatprep.subr.bf16.mxu0 %v1178
  %1220 = vmatpush1.bf16.msra.mxu0 %v1177
  %1221 = vmatprep.subr.bf16.mxu0 %v1174
  %1222 = vmatpush1.bf16.msra.mxu0 %v1173
  %1223 = vmatprep.subr.bf16.mxu0 %v1170
  %1224 = vmatpush1.bf16.msra.mxu0 %v1169
  %1225 = vmatprep.subr.bf16.mxu0 %v1166
  %1226 = vmatpush1.bf16.msra.mxu0 %v1165
  %1227 = vmatprep.subr.bf16.mxu0 %v1162
  %1228 = vmatpush1.bf16.msra.mxu0 %v1161
  %1229 = vmatprep.subr.bf16.mxu0 %v1158
  %1230 = vmatpush1.bf16.msra.mxu0 %v1157
  %1231 = vmatprep.subr.bf16.mxu0 %v1154
  %1232 = vmatpush1.bf16.msra.mxu0 %v1153
  %1233 = vmatprep.subr.bf16.mxu0 0
  %1234 = vmatpush2.bf16.msra.mxu0 0
  %1235 = vmatprep.subr.bf16.mxu0 0
  %1236 = vmatpush2.bf16.msra.mxu0 0
  %1237 = vmatprep.subr.bf16.mxu0 0
  %1238 = vmatpush2.bf16.msra.mxu0 0
  %1239 = vmatprep.subr.bf16.mxu0 0
  %1240 = vmatpush2.bf16.msra.mxu0 0
  %1241 = vmatprep.subr.bf16.mxu0 0
  %1242 = vmatpush2.bf16.msra.mxu0 0
  %1243 = vmatprep.subr.bf16.mxu0 0
  %1244 = vmatpush2.bf16.msra.mxu0 0
  %1245 = vmatprep.subr.bf16.mxu0 0
  %1246 = vmatpush2.bf16.msra.mxu0 0
  %1247 = vmatprep.subr.bf16.mxu0 0
  %1248 = vmatpush2.bf16.msra.mxu0 0
  %1249 = vmatprep.mubr.bf16.mxu0 0
  %1250 = vmatmul.mubr.bf16.gmra.mxu0 %v1024
  %v1251 = vpop.f32.mrf.mxu0
  %v1252 = vadd.f32 0.0, %v1251
  %v1253 = vpop.f32.mrf.mxu0
  %v1254 = vadd.f32 0.0, %v1253
  %v1255 = vpop.f32.mrf.mxu0
  %v1256 = vpop.f32.mrf.mxu0
  %1257 = vdwg.mxu0
  %1258 = vmatprep.subr.bf16.mxu0 %v1184
  %1259 = vmatpush1.bf16.msra.mxu0 %v1183
  %1260 = vmatprep.subr.bf16.mxu0 %v1180
  %1261 = vmatpush1.bf16.msra.mxu0 %v1179
  %1262 = vmatprep.subr.bf16.mxu0 %v1176
  %1263 = vmatpush1.bf16.msra.mxu0 %v1175
  %1264 = vmatprep.subr.bf16.mxu0 %v1172
  %1265 = vmatpush1.bf16.msra.mxu0 %v1171
  %1266 = vmatprep.subr.bf16.mxu0 %v1168
  %1267 = vmatpush1.bf16.msra.mxu0 %v1167
  %1268 = vmatprep.subr.bf16.mxu0 %v1164
  %1269 = vmatpush1.bf16.msra.mxu0 %v1163
  %1270 = vmatprep.subr.bf16.mxu0 %v1160
  %1271 = vmatpush1.bf16.msra.mxu0 %v1159
  %1272 = vmatprep.subr.bf16.mxu0 %v1156
  %1273 = vmatpush1.bf16.msra.mxu0 %v1155
  %1274 = vmatprep.subr.bf16.mxu0 0
  %1275 = vmatpush2.bf16.msra.mxu0 0
  %1276 = vmatprep.subr.bf16.mxu0 0
  %1277 = vmatpush2.bf16.msra.mxu0 0
  %1278 = vmatprep.subr.bf16.mxu0 0
  %1279 = vmatpush2.bf16.msra.mxu0 0
  %1280 = vmatprep.subr.bf16.mxu0 0
  %1281 = vmatpush2.bf16.msra.mxu0 0
  %1282 = vmatprep.subr.bf16.mxu0 0
  %1283 = vmatpush2.bf16.msra.mxu0 0
  %1284 = vmatprep.subr.bf16.mxu0 0
  %1285 = vmatpush2.bf16.msra.mxu0 0
  %1286 = vmatprep.subr.bf16.mxu0 0
  %1287 = vmatpush2.bf16.msra.mxu0 0
  %1288 = vmatprep.subr.bf16.mxu0 0
  %1289 = vmatpush2.bf16.msra.mxu0 0
  %1290 = vmatprep.mubr.bf16.mxu0 0
  %1291 = vmatmul.mubr.bf16.gmra.mxu0 %v1024
  %v1292 = vpop.f32.mrf.mxu0
  %v1293 = vadd.f32 0.0, %v1292
  %v1294 = vpop.f32.mrf.mxu0
  %v1295 = vadd.f32 0.0, %v1294
  %v1296 = vpop.f32.mrf.mxu0
  %v1297 = vpop.f32.mrf.mxu0
  %1298 = vdwg.mxu0
  %v1303 = vcombine.low %v1252, %v1254
  %v1304 = vcombine.low %v1293, %v1295
  %v1306 = vunpack.c.l.s4 1983009808
  %v1307 = vunpack.c.0.s8 %v1306
  %v1308 = vlaneseq
  %v1309 = vshrl.u32 %v1308, 7
  %v1310 = vsub.s32 %v1307, %v1309
  %v1311 = vrot.slane %v1303, %v1310
  %v1313 = vunpack.c.l.s4 1983009808
  %v1314 = vunpack.c.0.s8 %v1313
  %v1315 = vlaneseq
  %v1316 = vshrl.u32 %v1315, 7
  %v1317 = vsub.s32 %v1314, %v1316
  %v1318 = vrot.slane %v1304, %v1317
  %v1319 = vcombine.low %v1311, %v1318
  %v1321 = vadd.f32 %v1023, %v1319
  %v1322 = vxor.u32 %v1321, 2147483648
  %v1323 = vmul.f32 %v1322, 1.442695
  %v1324 = vpow.pop %v1323
  %v1325 = vadd.f32 %v1324, 1.0
  %v1326 = vrcp.pop %v1325
  %v1327 = vmul.f32 1.0, %v1326
  %v1329 = vrot.slane %v1321, 2
  %v1331 = vxor.u32 %v1329, 2147483648
  %v1332 = vmul.f32 %v1331, 1.442695
  %v1333 = vpow.pop %v1332
  %v1334 = vadd.f32 %v1333, 1.0
  %v1335 = vrcp.pop %v1334
  %v1336 = vmul.f32 1.0, %v1335
  %v1337 = vrot.slane %v1321, 4
  %v1339 = vtanh.pop %v1337
  %v1340 = vrot.slane %v1321, 6
  %v1342 = vxor.u32 %v1340, 2147483648
  %v1343 = vmul.f32 %v1342, 1.442695
  %v1344 = vpow.pop %v1343
  %v1345 = vadd.f32 %v1344, 1.0
  %v1346 = vrcp.pop %v1345
  %v1347 = vmul.f32 1.0, %v1346
  %v1348 = vmul.f32 %v1336, %v1017
  %v1349 = vmul.f32 %v1327, %v1339
  %v1350 = vadd.f32 %v1348, %v1349
  %v1351 = vtanh.pop %v1350
  %v1352 = vmul.f32 %v1347, %v1351
  %s1353 = scalar_lea.vmem %s3, 6
  %1354 = vst [vmem:[%s1353] sm:$0x3] %v1352
  %s1355 = scalar_lea.vmem %s0, 32
  %v1356 = vld [vmem:[%s1355] sm:$0xff]
  %v1357 = vpack.c.bf16 %v1352, %v1352
  %v1358 = vld [vmem:[%s1] sm:$0xff]
  %v1359 = vld [vmem:[%s1 + $0x8] sm:$0xff]
  %v1360 = vld [vmem:[%s1 + $0x10] sm:$0xff]
  %v1361 = vld [vmem:[%s1 + $0x18] sm:$0xff]
  %v1362 = vld [vmem:[%s1 + $0x20] sm:$0xff]
  %v1363 = vld [vmem:[%s1 + $0x28] sm:$0xff]
  %v1364 = vld [vmem:[%s1 + $0x30] sm:$0xff]
  %v1365 = vld [vmem:[%s1 + $0x38] sm:$0xff]
  %v1366 = vld [vmem:[%s1 + $0x40] sm:$0xff]
  %v1367 = vld [vmem:[%s1 + $0x48] sm:$0xff]
  %v1368 = vld [vmem:[%s1 + $0x50] sm:$0xff]
  %v1369 = vld [vmem:[%s1 + $0x58] sm:$0xff]
  %v1370 = vld [vmem:[%s1 + $0x60] sm:$0xff]
  %v1371 = vld [vmem:[%s1 + $0x68] sm:$0xff]
  %v1372 = vld [vmem:[%s1 + $0x70] sm:$0xff]
  %v1373 = vld [vmem:[%s1 + $0x78] sm:$0xff]
  %v1374 = vld [vmem:[%s1 + $0x80] sm:$0xff]
  %v1375 = vld [vmem:[%s1 + $0x88] sm:$0xff]
  %v1376 = vld [vmem:[%s1 + $0x90] sm:$0xff]
  %v1377 = vld [vmem:[%s1 + $0x98] sm:$0xff]
  %v1378 = vld [vmem:[%s1 + $0xa0] sm:$0xff]
  %v1379 = vld [vmem:[%s1 + $0xa8] sm:$0xff]
  %v1380 = vld [vmem:[%s1 + $0xb0] sm:$0xff]
  %v1381 = vld [vmem:[%s1 + $0xb8] sm:$0xff]
  %v1382 = vld [vmem:[%s1 + $0xc0] sm:$0xff]
  %v1383 = vld [vmem:[%s1 + $0xc8] sm:$0xff]
  %v1384 = vld [vmem:[%s1 + $0xd0] sm:$0xff]
  %v1385 = vld [vmem:[%s1 + $0xd8] sm:$0xff]
  %v1386 = vld [vmem:[%s1 + $0xe0] sm:$0xff]
  %v1387 = vld [vmem:[%s1 + $0xe8] sm:$0xff]
  %v1388 = vld [vmem:[%s1 + $0xf0] sm:$0xff]
  %v1389 = vld [vmem:[%s1 + $0xf8] sm:$0xff]
  %v1422 = vunpack.c.l.b16 %v1358
  %v1423 = vunpack.c.h.b16 %v1358
  %v1424 = vunpack.c.l.b16 %v1359
  %v1425 = vunpack.c.h.b16 %v1359
  %v1426 = vunpack.c.l.b16 %v1360
  %v1427 = vunpack.c.h.b16 %v1360
  %v1428 = vunpack.c.l.b16 %v1361
  %v1429 = vunpack.c.h.b16 %v1361
  %v1430 = vunpack.c.l.b16 %v1362
  %v1431 = vunpack.c.h.b16 %v1362
  %v1432 = vunpack.c.l.b16 %v1363
  %v1433 = vunpack.c.h.b16 %v1363
  %v1434 = vunpack.c.l.b16 %v1364
  %v1435 = vunpack.c.h.b16 %v1364
  %v1436 = vunpack.c.l.b16 %v1365
  %v1437 = vunpack.c.h.b16 %v1365
  %v1438 = vunpack.c.l.b16 %v1366
  %v1439 = vunpack.c.h.b16 %v1366
  %v1440 = vunpack.c.l.b16 %v1367
  %v1441 = vunpack.c.h.b16 %v1367
  %v1442 = vunpack.c.l.b16 %v1368
  %v1443 = vunpack.c.h.b16 %v1368
  %v1444 = vunpack.c.l.b16 %v1369
  %v1445 = vunpack.c.h.b16 %v1369
  %v1446 = vunpack.c.l.b16 %v1370
  %v1447 = vunpack.c.h.b16 %v1370
  %v1448 = vunpack.c.l.b16 %v1371
  %v1449 = vunpack.c.h.b16 %v1371
  %v1450 = vunpack.c.l.b16 %v1372
  %v1451 = vunpack.c.h.b16 %v1372
  %v1452 = vunpack.c.l.b16 %v1373
  %v1453 = vunpack.c.h.b16 %v1373
  %v1454 = vunpack.c.l.b16 %v1374
  %v1455 = vunpack.c.h.b16 %v1374
  %v1456 = vunpack.c.l.b16 %v1375
  %v1457 = vunpack.c.h.b16 %v1375
  %v1458 = vunpack.c.l.b16 %v1376
  %v1459 = vunpack.c.h.b16 %v1376
  %v1460 = vunpack.c.l.b16 %v1377
  %v1461 = vunpack.c.h.b16 %v1377
  %v1462 = vunpack.c.l.b16 %v1378
  %v1463 = vunpack.c.h.b16 %v1378
  %v1464 = vunpack.c.l.b16 %v1379
  %v1465 = vunpack.c.h.b16 %v1379
  %v1466 = vunpack.c.l.b16 %v1380
  %v1467 = vunpack.c.h.b16 %v1380
  %v1468 = vunpack.c.l.b16 %v1381
  %v1469 = vunpack.c.h.b16 %v1381
  %v1470 = vunpack.c.l.b16 %v1382
  %v1471 = vunpack.c.h.b16 %v1382
  %v1472 = vunpack.c.l.b16 %v1383
  %v1473 = vunpack.c.h.b16 %v1383
  %v1474 = vunpack.c.l.b16 %v1384
  %v1475 = vunpack.c.h.b16 %v1384
  %v1476 = vunpack.c.l.b16 %v1385
  %v1477 = vunpack.c.h.b16 %v1385
  %v1478 = vunpack.c.l.b16 %v1386
  %v1479 = vunpack.c.h.b16 %v1386
  %v1480 = vunpack.c.l.b16 %v1387
  %v1481 = vunpack.c.h.b16 %v1387
  %v1482 = vunpack.c.l.b16 %v1388
  %v1483 = vunpack.c.h.b16 %v1388
  %v1484 = vunpack.c.l.b16 %v1389
  %v1485 = vunpack.c.h.b16 %v1389
  %v1486 = vpack.c.b16 %v1426, %v1422
  %v1487 = vpack.c.b16 %v1427, %v1423
  %v1488 = vpack.c.b16 %v1428, %v1424
  %v1489 = vpack.c.b16 %v1429, %v1425
  %v1490 = vpack.c.b16 %v1434, %v1430
  %v1491 = vpack.c.b16 %v1435, %v1431
  %v1492 = vpack.c.b16 %v1436, %v1432
  %v1493 = vpack.c.b16 %v1437, %v1433
  %v1494 = vpack.c.b16 %v1442, %v1438
  %v1495 = vpack.c.b16 %v1443, %v1439
  %v1496 = vpack.c.b16 %v1444, %v1440
  %v1497 = vpack.c.b16 %v1445, %v1441
  %v1498 = vpack.c.b16 %v1450, %v1446
  %v1499 = vpack.c.b16 %v1451, %v1447
  %v1500 = vpack.c.b16 %v1452, %v1448
  %v1501 = vpack.c.b16 %v1453, %v1449
  %v1502 = vpack.c.b16 %v1458, %v1454
  %v1503 = vpack.c.b16 %v1459, %v1455
  %v1504 = vpack.c.b16 %v1460, %v1456
  %v1505 = vpack.c.b16 %v1461, %v1457
  %v1506 = vpack.c.b16 %v1466, %v1462
  %v1507 = vpack.c.b16 %v1467, %v1463
  %v1508 = vpack.c.b16 %v1468, %v1464
  %v1509 = vpack.c.b16 %v1469, %v1465
  %v1510 = vpack.c.b16 %v1474, %v1470
  %v1511 = vpack.c.b16 %v1475, %v1471
  %v1512 = vpack.c.b16 %v1476, %v1472
  %v1513 = vpack.c.b16 %v1477, %v1473
  %v1514 = vpack.c.b16 %v1482, %v1478
  %v1515 = vpack.c.b16 %v1483, %v1479
  %v1516 = vpack.c.b16 %v1484, %v1480
  %v1517 = vpack.c.b16 %v1485, %v1481
  %1550 = vmatprep.subr.bf16.mxu0 %v1515
  %1551 = vmatpush1.bf16.msra.mxu0 %v1514
  %1552 = vmatprep.subr.bf16.mxu0 %v1511
  %1553 = vmatpush1.bf16.msra.mxu0 %v1510
  %1554 = vmatprep.subr.bf16.mxu0 %v1507
  %1555 = vmatpush1.bf16.msra.mxu0 %v1506
  %1556 = vmatprep.subr.bf16.mxu0 %v1503
  %1557 = vmatpush1.bf16.msra.mxu0 %v1502
  %1558 = vmatprep.subr.bf16.mxu0 %v1499
  %1559 = vmatpush1.bf16.msra.mxu0 %v1498
  %1560 = vmatprep.subr.bf16.mxu0 %v1495
  %1561 = vmatpush1.bf16.msra.mxu0 %v1494
  %1562 = vmatprep.subr.bf16.mxu0 %v1491
  %1563 = vmatpush1.bf16.msra.mxu0 %v1490
  %1564 = vmatprep.subr.bf16.mxu0 %v1487
  %1565 = vmatpush1.bf16.msra.mxu0 %v1486
  %1566 = vmatprep.subr.bf16.mxu0 0
  %1567 = vmatpush2.bf16.msra.mxu0 0
  %1568 = vmatprep.subr.bf16.mxu0 0
  %1569 = vmatpush2.bf16.msra.mxu0 0
  %1570 = vmatprep.subr.bf16.mxu0 0
  %1571 = vmatpush2.bf16.msra.mxu0 0
  %1572 = vmatprep.subr.bf16.mxu0 0
  %1573 = vmatpush2.bf16.msra.mxu0 0
  %1574 = vmatprep.subr.bf16.mxu0 0
  %1575 = vmatpush2.bf16.msra.mxu0 0
  %1576 = vmatprep.subr.bf16.mxu0 0
  %1577 = vmatpush2.bf16.msra.mxu0 0
  %1578 = vmatprep.subr.bf16.mxu0 0
  %1579 = vmatpush2.bf16.msra.mxu0 0
  %1580 = vmatprep.subr.bf16.mxu0 0
  %1581 = vmatpush2.bf16.msra.mxu0 0
  %1582 = vmatprep.mubr.bf16.mxu0 0
  %1583 = vmatmul.mubr.bf16.gmra.mxu0 %v1357
  %v1584 = vpop.f32.mrf.mxu0
  %v1585 = vadd.f32 0.0, %v1584
  %v1586 = vpop.f32.mrf.mxu0
  %v1587 = vadd.f32 0.0, %v1586
  %v1588 = vpop.f32.mrf.mxu0
  %v1589 = vpop.f32.mrf.mxu0
  %1590 = vdwg.mxu0
  %1591 = vmatprep.subr.bf16.mxu0 %v1517
  %1592 = vmatpush1.bf16.msra.mxu0 %v1516
  %1593 = vmatprep.subr.bf16.mxu0 %v1513
  %1594 = vmatpush1.bf16.msra.mxu0 %v1512
  %1595 = vmatprep.subr.bf16.mxu0 %v1509
  %1596 = vmatpush1.bf16.msra.mxu0 %v1508
  %1597 = vmatprep.subr.bf16.mxu0 %v1505
  %1598 = vmatpush1.bf16.msra.mxu0 %v1504
  %1599 = vmatprep.subr.bf16.mxu0 %v1501
  %1600 = vmatpush1.bf16.msra.mxu0 %v1500
  %1601 = vmatprep.subr.bf16.mxu0 %v1497
  %1602 = vmatpush1.bf16.msra.mxu0 %v1496
  %1603 = vmatprep.subr.bf16.mxu0 %v1493
  %1604 = vmatpush1.bf16.msra.mxu0 %v1492
  %1605 = vmatprep.subr.bf16.mxu0 %v1489
  %1606 = vmatpush1.bf16.msra.mxu0 %v1488
  %1607 = vmatprep.subr.bf16.mxu0 0
  %1608 = vmatpush2.bf16.msra.mxu0 0
  %1609 = vmatprep.subr.bf16.mxu0 0
  %1610 = vmatpush2.bf16.msra.mxu0 0
  %1611 = vmatprep.subr.bf16.mxu0 0
  %1612 = vmatpush2.bf16.msra.mxu0 0
  %1613 = vmatprep.subr.bf16.mxu0 0
  %1614 = vmatpush2.bf16.msra.mxu0 0
  %1615 = vmatprep.subr.bf16.mxu0 0
  %1616 = vmatpush2.bf16.msra.mxu0 0
  %1617 = vmatprep.subr.bf16.mxu0 0
  %1618 = vmatpush2.bf16.msra.mxu0 0
  %1619 = vmatprep.subr.bf16.mxu0 0
  %1620 = vmatpush2.bf16.msra.mxu0 0
  %1621 = vmatprep.subr.bf16.mxu0 0
  %1622 = vmatpush2.bf16.msra.mxu0 0
  %1623 = vmatprep.mubr.bf16.mxu0 0
  %1624 = vmatmul.mubr.bf16.gmra.mxu0 %v1357
  %v1625 = vpop.f32.mrf.mxu0
  %v1626 = vadd.f32 0.0, %v1625
  %v1627 = vpop.f32.mrf.mxu0
  %v1628 = vadd.f32 0.0, %v1627
  %v1629 = vpop.f32.mrf.mxu0
  %v1630 = vpop.f32.mrf.mxu0
  %1631 = vdwg.mxu0
  %v1636 = vcombine.low %v1585, %v1587
  %v1637 = vcombine.low %v1626, %v1628
  %v1639 = vunpack.c.l.s4 1983009808
  %v1640 = vunpack.c.0.s8 %v1639
  %v1641 = vlaneseq
  %v1642 = vshrl.u32 %v1641, 7
  %v1643 = vsub.s32 %v1640, %v1642
  %v1644 = vrot.slane %v1636, %v1643
  %v1646 = vunpack.c.l.s4 1983009808
  %v1647 = vunpack.c.0.s8 %v1646
  %v1648 = vlaneseq
  %v1649 = vshrl.u32 %v1648, 7
  %v1650 = vsub.s32 %v1647, %v1649
  %v1651 = vrot.slane %v1637, %v1650
  %v1652 = vcombine.low %v1644, %v1651
  %v1654 = vadd.f32 %v1356, %v1652
  %v1655 = vxor.u32 %v1654, 2147483648
  %v1656 = vmul.f32 %v1655, 1.442695
  %v1657 = vpow.pop %v1656
  %v1658 = vadd.f32 %v1657, 1.0
  %v1659 = vrcp.pop %v1658
  %v1660 = vmul.f32 1.0, %v1659
  %v1662 = vrot.slane %v1654, 2
  %v1664 = vxor.u32 %v1662, 2147483648
  %v1665 = vmul.f32 %v1664, 1.442695
  %v1666 = vpow.pop %v1665
  %v1667 = vadd.f32 %v1666, 1.0
  %v1668 = vrcp.pop %v1667
  %v1669 = vmul.f32 1.0, %v1668
  %v1670 = vrot.slane %v1654, 4
  %v1672 = vtanh.pop %v1670
  %v1673 = vrot.slane %v1654, 6
  %v1675 = vxor.u32 %v1673, 2147483648
  %v1676 = vmul.f32 %v1675, 1.442695
  %v1677 = vpow.pop %v1676
  %v1678 = vadd.f32 %v1677, 1.0
  %v1679 = vrcp.pop %v1678
  %v1680 = vmul.f32 1.0, %v1679
  %v1681 = vmul.f32 %v1669, %v1350
  %v1682 = vmul.f32 %v1660, %v1672
  %v1683 = vadd.f32 %v1681, %v1682
  %v1684 = vtanh.pop %v1683
  %v1685 = vmul.f32 %v1680, %v1684
  %s1686 = scalar_lea.vmem %s3, 8
  %1687 = vst [vmem:[%s1686] sm:$0x3] %v1685
  %s1688 = scalar_lea.vmem %s0, 40
  %v1689 = vld [vmem:[%s1688] sm:$0xff]
  %v1690 = vpack.c.bf16 %v1685, %v1685
  %v1691 = vld [vmem:[%s1] sm:$0xff]
  %v1692 = vld [vmem:[%s1 + $0x8] sm:$0xff]
  %v1693 = vld [vmem:[%s1 + $0x10] sm:$0xff]
  %v1694 = vld [vmem:[%s1 + $0x18] sm:$0xff]
  %v1695 = vld [vmem:[%s1 + $0x20] sm:$0xff]
  %v1696 = vld [vmem:[%s1 + $0x28] sm:$0xff]
  %v1697 = vld [vmem:[%s1 + $0x30] sm:$0xff]
  %v1698 = vld [vmem:[%s1 + $0x38] sm:$0xff]
  %v1699 = vld [vmem:[%s1 + $0x40] sm:$0xff]
  %v1700 = vld [vmem:[%s1 + $0x48] sm:$0xff]
  %v1701 = vld [vmem:[%s1 + $0x50] sm:$0xff]
  %v1702 = vld [vmem:[%s1 + $0x58] sm:$0xff]
  %v1703 = vld [vmem:[%s1 + $0x60] sm:$0xff]
  %v1704 = vld [vmem:[%s1 + $0x68] sm:$0xff]
  %v1705 = vld [vmem:[%s1 + $0x70] sm:$0xff]
  %v1706 = vld [vmem:[%s1 + $0x78] sm:$0xff]
  %v1707 = vld [vmem:[%s1 + $0x80] sm:$0xff]
  %v1708 = vld [vmem:[%s1 + $0x88] sm:$0xff]
  %v1709 = vld [vmem:[%s1 + $0x90] sm:$0xff]
  %v1710 = vld [vmem:[%s1 + $0x98] sm:$0xff]
  %v1711 = vld [vmem:[%s1 + $0xa0] sm:$0xff]
  %v1712 = vld [vmem:[%s1 + $0xa8] sm:$0xff]
  %v1713 = vld [vmem:[%s1 + $0xb0] sm:$0xff]
  %v1714 = vld [vmem:[%s1 + $0xb8] sm:$0xff]
  %v1715 = vld [vmem:[%s1 + $0xc0] sm:$0xff]
  %v1716 = vld [vmem:[%s1 + $0xc8] sm:$0xff]
  %v1717 = vld [vmem:[%s1 + $0xd0] sm:$0xff]
  %v1718 = vld [vmem:[%s1 + $0xd8] sm:$0xff]
  %v1719 = vld [vmem:[%s1 + $0xe0] sm:$0xff]
  %v1720 = vld [vmem:[%s1 + $0xe8] sm:$0xff]
  %v1721 = vld [vmem:[%s1 + $0xf0] sm:$0xff]
  %v1722 = vld [vmem:[%s1 + $0xf8] sm:$0xff]
  %v1755 = vunpack.c.l.b16 %v1691
  %v1756 = vunpack.c.h.b16 %v1691
  %v1757 = vunpack.c.l.b16 %v1692
  %v1758 = vunpack.c.h.b16 %v1692
  %v1759 = vunpack.c.l.b16 %v1693
  %v1760 = vunpack.c.h.b16 %v1693
  %v1761 = vunpack.c.l.b16 %v1694
  %v1762 = vunpack.c.h.b16 %v1694
  %v1763 = vunpack.c.l.b16 %v1695
  %v1764 = vunpack.c.h.b16 %v1695
  %v1765 = vunpack.c.l.b16 %v1696
  %v1766 = vunpack.c.h.b16 %v1696
  %v1767 = vunpack.c.l.b16 %v1697
  %v1768 = vunpack.c.h.b16 %v1697
  %v1769 = vunpack.c.l.b16 %v1698
  %v1770 = vunpack.c.h.b16 %v1698
  %v1771 = vunpack.c.l.b16 %v1699
  %v1772 = vunpack.c.h.b16 %v1699
  %v1773 = vunpack.c.l.b16 %v1700
  %v1774 = vunpack.c.h.b16 %v1700
  %v1775 = vunpack.c.l.b16 %v1701
  %v1776 = vunpack.c.h.b16 %v1701
  %v1777 = vunpack.c.l.b16 %v1702
  %v1778 = vunpack.c.h.b16 %v1702
  %v1779 = vunpack.c.l.b16 %v1703
  %v1780 = vunpack.c.h.b16 %v1703
  %v1781 = vunpack.c.l.b16 %v1704
  %v1782 = vunpack.c.h.b16 %v1704
  %v1783 = vunpack.c.l.b16 %v1705
  %v1784 = vunpack.c.h.b16 %v1705
  %v1785 = vunpack.c.l.b16 %v1706
  %v1786 = vunpack.c.h.b16 %v1706
  %v1787 = vunpack.c.l.b16 %v1707
  %v1788 = vunpack.c.h.b16 %v1707
  %v1789 = vunpack.c.l.b16 %v1708
  %v1790 = vunpack.c.h.b16 %v1708
  %v1791 = vunpack.c.l.b16 %v1709
  %v1792 = vunpack.c.h.b16 %v1709
  %v1793 = vunpack.c.l.b16 %v1710
  %v1794 = vunpack.c.h.b16 %v1710
  %v1795 = vunpack.c.l.b16 %v1711
  %v1796 = vunpack.c.h.b16 %v1711
  %v1797 = vunpack.c.l.b16 %v1712
  %v1798 = vunpack.c.h.b16 %v1712
  %v1799 = vunpack.c.l.b16 %v1713
  %v1800 = vunpack.c.h.b16 %v1713
  %v1801 = vunpack.c.l.b16 %v1714
  %v1802 = vunpack.c.h.b16 %v1714
  %v1803 = vunpack.c.l.b16 %v1715
  %v1804 = vunpack.c.h.b16 %v1715
  %v1805 = vunpack.c.l.b16 %v1716
  %v1806 = vunpack.c.h.b16 %v1716
  %v1807 = vunpack.c.l.b16 %v1717
  %v1808 = vunpack.c.h.b16 %v1717
  %v1809 = vunpack.c.l.b16 %v1718
  %v1810 = vunpack.c.h.b16 %v1718
  %v1811 = vunpack.c.l.b16 %v1719
  %v1812 = vunpack.c.h.b16 %v1719
  %v1813 = vunpack.c.l.b16 %v1720
  %v1814 = vunpack.c.h.b16 %v1720
  %v1815 = vunpack.c.l.b16 %v1721
  %v1816 = vunpack.c.h.b16 %v1721
  %v1817 = vunpack.c.l.b16 %v1722
  %v1818 = vunpack.c.h.b16 %v1722
  %v1819 = vpack.c.b16 %v1759, %v1755
  %v1820 = vpack.c.b16 %v1760, %v1756
  %v1821 = vpack.c.b16 %v1761, %v1757
  %v1822 = vpack.c.b16 %v1762, %v1758
  %v1823 = vpack.c.b16 %v1767, %v1763
  %v1824 = vpack.c.b16 %v1768, %v1764
  %v1825 = vpack.c.b16 %v1769, %v1765
  %v1826 = vpack.c.b16 %v1770, %v1766
  %v1827 = vpack.c.b16 %v1775, %v1771
  %v1828 = vpack.c.b16 %v1776, %v1772
  %v1829 = vpack.c.b16 %v1777, %v1773
  %v1830 = vpack.c.b16 %v1778, %v1774
  %v1831 = vpack.c.b16 %v1783, %v1779
  %v1832 = vpack.c.b16 %v1784, %v1780
  %v1833 = vpack.c.b16 %v1785, %v1781
  %v1834 = vpack.c.b16 %v1786, %v1782
  %v1835 = vpack.c.b16 %v1791, %v1787
  %v1836 = vpack.c.b16 %v1792, %v1788
  %v1837 = vpack.c.b16 %v1793, %v1789
  %v1838 = vpack.c.b16 %v1794, %v1790
  %v1839 = vpack.c.b16 %v1799, %v1795
  %v1840 = vpack.c.b16 %v1800, %v1796
  %v1841 = vpack.c.b16 %v1801, %v1797
  %v1842 = vpack.c.b16 %v1802, %v1798
  %v1843 = vpack.c.b16 %v1807, %v1803
  %v1844 = vpack.c.b16 %v1808, %v1804
  %v1845 = vpack.c.b16 %v1809, %v1805
  %v1846 = vpack.c.b16 %v1810, %v1806
  %v1847 = vpack.c.b16 %v1815, %v1811
  %v1848 = vpack.c.b16 %v1816, %v1812
  %v1849 = vpack.c.b16 %v1817, %v1813
  %v1850 = vpack.c.b16 %v1818, %v1814
  %1883 = vmatprep.subr.bf16.mxu0 %v1848
  %1884 = vmatpush1.bf16.msra.mxu0 %v1847
  %1885 = vmatprep.subr.bf16.mxu0 %v1844
  %1886 = vmatpush1.bf16.msra.mxu0 %v1843
  %1887 = vmatprep.subr.bf16.mxu0 %v1840
  %1888 = vmatpush1.bf16.msra.mxu0 %v1839
  %1889 = vmatprep.subr.bf16.mxu0 %v1836
  %1890 = vmatpush1.bf16.msra.mxu0 %v1835
  %1891 = vmatprep.subr.bf16.mxu0 %v1832
  %1892 = vmatpush1.bf16.msra.mxu0 %v1831
  %1893 = vmatprep.subr.bf16.mxu0 %v1828
  %1894 = vmatpush1.bf16.msra.mxu0 %v1827
  %1895 = vmatprep.subr.bf16.mxu0 %v1824
  %1896 = vmatpush1.bf16.msra.mxu0 %v1823
  %1897 = vmatprep.subr.bf16.mxu0 %v1820
  %1898 = vmatpush1.bf16.msra.mxu0 %v1819
  %1899 = vmatprep.subr.bf16.mxu0 0
  %1900 = vmatpush2.bf16.msra.mxu0 0
  %1901 = vmatprep.subr.bf16.mxu0 0
  %1902 = vmatpush2.bf16.msra.mxu0 0
  %1903 = vmatprep.subr.bf16.mxu0 0
  %1904 = vmatpush2.bf16.msra.mxu0 0
  %1905 = vmatprep.subr.bf16.mxu0 0
  %1906 = vmatpush2.bf16.msra.mxu0 0
  %1907 = vmatprep.subr.bf16.mxu0 0
  %1908 = vmatpush2.bf16.msra.mxu0 0
  %1909 = vmatprep.subr.bf16.mxu0 0
  %1910 = vmatpush2.bf16.msra.mxu0 0
  %1911 = vmatprep.subr.bf16.mxu0 0
  %1912 = vmatpush2.bf16.msra.mxu0 0
  %1913 = vmatprep.subr.bf16.mxu0 0
  %1914 = vmatpush2.bf16.msra.mxu0 0
  %1915 = vmatprep.mubr.bf16.mxu0 0
  %1916 = vmatmul.mubr.bf16.gmra.mxu0 %v1690
  %v1917 = vpop.f32.mrf.mxu0
  %v1918 = vadd.f32 0.0, %v1917
  %v1919 = vpop.f32.mrf.mxu0
  %v1920 = vadd.f32 0.0, %v1919
  %v1921 = vpop.f32.mrf.mxu0
  %v1922 = vpop.f32.mrf.mxu0
  %1923 = vdwg.mxu0
  %1924 = vmatprep.subr.bf16.mxu0 %v1850
  %1925 = vmatpush1.bf16.msra.mxu0 %v1849
  %1926 = vmatprep.subr.bf16.mxu0 %v1846
  %1927 = vmatpush1.bf16.msra.mxu0 %v1845
  %1928 = vmatprep.subr.bf16.mxu0 %v1842
  %1929 = vmatpush1.bf16.msra.mxu0 %v1841
  %1930 = vmatprep.subr.bf16.mxu0 %v1838
  %1931 = vmatpush1.bf16.msra.mxu0 %v1837
  %1932 = vmatprep.subr.bf16.mxu0 %v1834
  %1933 = vmatpush1.bf16.msra.mxu0 %v1833
  %1934 = vmatprep.subr.bf16.mxu0 %v1830
  %1935 = vmatpush1.bf16.msra.mxu0 %v1829
  %1936 = vmatprep.subr.bf16.mxu0 %v1826
  %1937 = vmatpush1.bf16.msra.mxu0 %v1825
  %1938 = vmatprep.subr.bf16.mxu0 %v1822
  %1939 = vmatpush1.bf16.msra.mxu0 %v1821
  %1940 = vmatprep.subr.bf16.mxu0 0
  %1941 = vmatpush2.bf16.msra.mxu0 0
  %1942 = vmatprep.subr.bf16.mxu0 0
  %1943 = vmatpush2.bf16.msra.mxu0 0
  %1944 = vmatprep.subr.bf16.mxu0 0
  %1945 = vmatpush2.bf16.msra.mxu0 0
  %1946 = vmatprep.subr.bf16.mxu0 0
  %1947 = vmatpush2.bf16.msra.mxu0 0
  %1948 = vmatprep.subr.bf16.mxu0 0
  %1949 = vmatpush2.bf16.msra.mxu0 0
  %1950 = vmatprep.subr.bf16.mxu0 0
  %1951 = vmatpush2.bf16.msra.mxu0 0
  %1952 = vmatprep.subr.bf16.mxu0 0
  %1953 = vmatpush2.bf16.msra.mxu0 0
  %1954 = vmatprep.subr.bf16.mxu0 0
  %1955 = vmatpush2.bf16.msra.mxu0 0
  %1956 = vmatprep.mubr.bf16.mxu0 0
  %1957 = vmatmul.mubr.bf16.gmra.mxu0 %v1690
  %v1958 = vpop.f32.mrf.mxu0
  %v1959 = vadd.f32 0.0, %v1958
  %v1960 = vpop.f32.mrf.mxu0
  %v1961 = vadd.f32 0.0, %v1960
  %v1962 = vpop.f32.mrf.mxu0
  %v1963 = vpop.f32.mrf.mxu0
  %1964 = vdwg.mxu0
  %v1969 = vcombine.low %v1918, %v1920
  %v1970 = vcombine.low %v1959, %v1961
  %v1972 = vunpack.c.l.s4 1983009808
  %v1973 = vunpack.c.0.s8 %v1972
  %v1974 = vlaneseq
  %v1975 = vshrl.u32 %v1974, 7
  %v1976 = vsub.s32 %v1973, %v1975
  %v1977 = vrot.slane %v1969, %v1976
  %v1979 = vunpack.c.l.s4 1983009808
  %v1980 = vunpack.c.0.s8 %v1979
  %v1981 = vlaneseq
  %v1982 = vshrl.u32 %v1981, 7
  %v1983 = vsub.s32 %v1980, %v1982
  %v1984 = vrot.slane %v1970, %v1983
  %v1985 = vcombine.low %v1977, %v1984
  %v1987 = vadd.f32 %v1689, %v1985
  %v1988 = vxor.u32 %v1987, 2147483648
  %v1989 = vmul.f32 %v1988, 1.442695
  %v1990 = vpow.pop %v1989
  %v1991 = vadd.f32 %v1990, 1.0
  %v1992 = vrcp.pop %v1991
  %v1993 = vmul.f32 1.0, %v1992
  %v1995 = vrot.slane %v1987, 2
  %v1997 = vxor.u32 %v1995, 2147483648
  %v1998 = vmul.f32 %v1997, 1.442695
  %v1999 = vpow.pop %v1998
  %v2000 = vadd.f32 %v1999, 1.0
  %v2001 = vrcp.pop %v2000
  %v2002 = vmul.f32 1.0, %v2001
  %v2003 = vrot.slane %v1987, 4
  %v2005 = vtanh.pop %v2003
  %v2006 = vrot.slane %v1987, 6
  %v2008 = vxor.u32 %v2006, 2147483648
  %v2009 = vmul.f32 %v2008, 1.442695
  %v2010 = vpow.pop %v2009
  %v2011 = vadd.f32 %v2010, 1.0
  %v2012 = vrcp.pop %v2011
  %v2013 = vmul.f32 1.0, %v2012
  %v2014 = vmul.f32 %v2002, %v1683
  %v2015 = vmul.f32 %v1993, %v2005
  %v2016 = vadd.f32 %v2014, %v2015
  %v2017 = vtanh.pop %v2016
  %v2018 = vmul.f32 %v2013, %v2017
  %s2019 = scalar_lea.vmem %s3, 10
  %2020 = vst [vmem:[%s2019] sm:$0x3] %v2018
  %s2021 = scalar_lea.vmem %s0, 48
  %v2022 = vld [vmem:[%s2021] sm:$0xff]
  %v2023 = vpack.c.bf16 %v2018, %v2018
  %v2024 = vld [vmem:[%s1] sm:$0xff]
  %v2025 = vld [vmem:[%s1 + $0x8] sm:$0xff]
  %v2026 = vld [vmem:[%s1 + $0x10] sm:$0xff]
  %v2027 = vld [vmem:[%s1 + $0x18] sm:$0xff]
  %v2028 = vld [vmem:[%s1 + $0x20] sm:$0xff]
  %v2029 = vld [vmem:[%s1 + $0x28] sm:$0xff]
  %v2030 = vld [vmem:[%s1 + $0x30] sm:$0xff]
  %v2031 = vld [vmem:[%s1 + $0x38] sm:$0xff]
  %v2032 = vld [vmem:[%s1 + $0x40] sm:$0xff]
  %v2033 = vld [vmem:[%s1 + $0x48] sm:$0xff]
  %v2034 = vld [vmem:[%s1 + $0x50] sm:$0xff]
  %v2035 = vld [vmem:[%s1 + $0x58] sm:$0xff]
  %v2036 = vld [vmem:[%s1 + $0x60] sm:$0xff]
  %v2037 = vld [vmem:[%s1 + $0x68] sm:$0xff]
  %v2038 = vld [vmem:[%s1 + $0x70] sm:$0xff]
  %v2039 = vld [vmem:[%s1 + $0x78] sm:$0xff]
  %v2040 = vld [vmem:[%s1 + $0x80] sm:$0xff]
  %v2041 = vld [vmem:[%s1 + $0x88] sm:$0xff]
  %v2042 = vld [vmem:[%s1 + $0x90] sm:$0xff]
  %v2043 = vld [vmem:[%s1 + $0x98] sm:$0xff]
  %v2044 = vld [vmem:[%s1 + $0xa0] sm:$0xff]
  %v2045 = vld [vmem:[%s1 + $0xa8] sm:$0xff]
  %v2046 = vld [vmem:[%s1 + $0xb0] sm:$0xff]
  %v2047 = vld [vmem:[%s1 + $0xb8] sm:$0xff]
  %v2048 = vld [vmem:[%s1 + $0xc0] sm:$0xff]
  %v2049 = vld [vmem:[%s1 + $0xc8] sm:$0xff]
  %v2050 = vld [vmem:[%s1 + $0xd0] sm:$0xff]
  %v2051 = vld [vmem:[%s1 + $0xd8] sm:$0xff]
  %v2052 = vld [vmem:[%s1 + $0xe0] sm:$0xff]
  %v2053 = vld [vmem:[%s1 + $0xe8] sm:$0xff]
  %v2054 = vld [vmem:[%s1 + $0xf0] sm:$0xff]
  %v2055 = vld [vmem:[%s1 + $0xf8] sm:$0xff]
  %v2088 = vunpack.c.l.b16 %v2024
  %v2089 = vunpack.c.h.b16 %v2024
  %v2090 = vunpack.c.l.b16 %v2025
  %v2091 = vunpack.c.h.b16 %v2025
  %v2092 = vunpack.c.l.b16 %v2026
  %v2093 = vunpack.c.h.b16 %v2026
  %v2094 = vunpack.c.l.b16 %v2027
  %v2095 = vunpack.c.h.b16 %v2027
  %v2096 = vunpack.c.l.b16 %v2028
  %v2097 = vunpack.c.h.b16 %v2028
  %v2098 = vunpack.c.l.b16 %v2029
  %v2099 = vunpack.c.h.b16 %v2029
  %v2100 = vunpack.c.l.b16 %v2030
  %v2101 = vunpack.c.h.b16 %v2030
  %v2102 = vunpack.c.l.b16 %v2031
  %v2103 = vunpack.c.h.b16 %v2031
  %v2104 = vunpack.c.l.b16 %v2032
  %v2105 = vunpack.c.h.b16 %v2032
  %v2106 = vunpack.c.l.b16 %v2033
  %v2107 = vunpack.c.h.b16 %v2033
  %v2108 = vunpack.c.l.b16 %v2034
  %v2109 = vunpack.c.h.b16 %v2034
  %v2110 = vunpack.c.l.b16 %v2035
  %v2111 = vunpack.c.h.b16 %v2035
  %v2112 = vunpack.c.l.b16 %v2036
  %v2113 = vunpack.c.h.b16 %v2036
  %v2114 = vunpack.c.l.b16 %v2037
  %v2115 = vunpack.c.h.b16 %v2037
  %v2116 = vunpack.c.l.b16 %v2038
  %v2117 = vunpack.c.h.b16 %v2038
  %v2118 = vunpack.c.l.b16 %v2039
  %v2119 = vunpack.c.h.b16 %v2039
  %v2120 = vunpack.c.l.b16 %v2040
  %v2121 = vunpack.c.h.b16 %v2040
  %v2122 = vunpack.c.l.b16 %v2041
  %v2123 = vunpack.c.h.b16 %v2041
  %v2124 = vunpack.c.l.b16 %v2042
  %v2125 = vunpack.c.h.b16 %v2042
  %v2126 = vunpack.c.l.b16 %v2043
  %v2127 = vunpack.c.h.b16 %v2043
  %v2128 = vunpack.c.l.b16 %v2044
  %v2129 = vunpack.c.h.b16 %v2044
  %v2130 = vunpack.c.l.b16 %v2045
  %v2131 = vunpack.c.h.b16 %v2045
  %v2132 = vunpack.c.l.b16 %v2046
  %v2133 = vunpack.c.h.b16 %v2046
  %v2134 = vunpack.c.l.b16 %v2047
  %v2135 = vunpack.c.h.b16 %v2047
  %v2136 = vunpack.c.l.b16 %v2048
  %v2137 = vunpack.c.h.b16 %v2048
  %v2138 = vunpack.c.l.b16 %v2049
  %v2139 = vunpack.c.h.b16 %v2049
  %v2140 = vunpack.c.l.b16 %v2050
  %v2141 = vunpack.c.h.b16 %v2050
  %v2142 = vunpack.c.l.b16 %v2051
  %v2143 = vunpack.c.h.b16 %v2051
  %v2144 = vunpack.c.l.b16 %v2052
  %v2145 = vunpack.c.h.b16 %v2052
  %v2146 = vunpack.c.l.b16 %v2053
  %v2147 = vunpack.c.h.b16 %v2053
  %v2148 = vunpack.c.l.b16 %v2054
  %v2149 = vunpack.c.h.b16 %v2054
  %v2150 = vunpack.c.l.b16 %v2055
  %v2151 = vunpack.c.h.b16 %v2055
  %v2152 = vpack.c.b16 %v2092, %v2088
  %v2153 = vpack.c.b16 %v2093, %v2089
  %v2154 = vpack.c.b16 %v2094, %v2090
  %v2155 = vpack.c.b16 %v2095, %v2091
  %v2156 = vpack.c.b16 %v2100, %v2096
  %v2157 = vpack.c.b16 %v2101, %v2097
  %v2158 = vpack.c.b16 %v2102, %v2098
  %v2159 = vpack.c.b16 %v2103, %v2099
  %v2160 = vpack.c.b16 %v2108, %v2104
  %v2161 = vpack.c.b16 %v2109, %v2105
  %v2162 = vpack.c.b16 %v2110, %v2106
  %v2163 = vpack.c.b16 %v2111, %v2107
  %v2164 = vpack.c.b16 %v2116, %v2112
  %v2165 = vpack.c.b16 %v2117, %v2113
  %v2166 = vpack.c.b16 %v2118, %v2114
  %v2167 = vpack.c.b16 %v2119, %v2115
  %v2168 = vpack.c.b16 %v2124, %v2120
  %v2169 = vpack.c.b16 %v2125, %v2121
  %v2170 = vpack.c.b16 %v2126, %v2122
  %v2171 = vpack.c.b16 %v2127, %v2123
  %v2172 = vpack.c.b16 %v2132, %v2128
  %v2173 = vpack.c.b16 %v2133, %v2129
  %v2174 = vpack.c.b16 %v2134, %v2130
  %v2175 = vpack.c.b16 %v2135, %v2131
  %v2176 = vpack.c.b16 %v2140, %v2136
  %v2177 = vpack.c.b16 %v2141, %v2137
  %v2178 = vpack.c.b16 %v2142, %v2138
  %v2179 = vpack.c.b16 %v2143, %v2139
  %v2180 = vpack.c.b16 %v2148, %v2144
  %v2181 = vpack.c.b16 %v2149, %v2145
  %v2182 = vpack.c.b16 %v2150, %v2146
  %v2183 = vpack.c.b16 %v2151, %v2147
  %2216 = vmatprep.subr.bf16.mxu0 %v2181
  %2217 = vmatpush1.bf16.msra.mxu0 %v2180
  %2218 = vmatprep.subr.bf16.mxu0 %v2177
  %2219 = vmatpush1.bf16.msra.mxu0 %v2176
  %2220 = vmatprep.subr.bf16.mxu0 %v2173
  %2221 = vmatpush1.bf16.msra.mxu0 %v2172
  %2222 = vmatprep.subr.bf16.mxu0 %v2169
  %2223 = vmatpush1.bf16.msra.mxu0 %v2168
  %2224 = vmatprep.subr.bf16.mxu0 %v2165
  %2225 = vmatpush1.bf16.msra.mxu0 %v2164
  %2226 = vmatprep.subr.bf16.mxu0 %v2161
  %2227 = vmatpush1.bf16.msra.mxu0 %v2160
  %2228 = vmatprep.subr.bf16.mxu0 %v2157
  %2229 = vmatpush1.bf16.msra.mxu0 %v2156
  %2230 = vmatprep.subr.bf16.mxu0 %v2153
  %2231 = vmatpush1.bf16.msra.mxu0 %v2152
  %2232 = vmatprep.subr.bf16.mxu0 0
  %2233 = vmatpush2.bf16.msra.mxu0 0
  %2234 = vmatprep.subr.bf16.mxu0 0
  %2235 = vmatpush2.bf16.msra.mxu0 0
  %2236 = vmatprep.subr.bf16.mxu0 0
  %2237 = vmatpush2.bf16.msra.mxu0 0
  %2238 = vmatprep.subr.bf16.mxu0 0
  %2239 = vmatpush2.bf16.msra.mxu0 0
  %2240 = vmatprep.subr.bf16.mxu0 0
  %2241 = vmatpush2.bf16.msra.mxu0 0
  %2242 = vmatprep.subr.bf16.mxu0 0
  %2243 = vmatpush2.bf16.msra.mxu0 0
  %2244 = vmatprep.subr.bf16.mxu0 0
  %2245 = vmatpush2.bf16.msra.mxu0 0
  %2246 = vmatprep.subr.bf16.mxu0 0
  %2247 = vmatpush2.bf16.msra.mxu0 0
  %2248 = vmatprep.mubr.bf16.mxu0 0
  %2249 = vmatmul.mubr.bf16.gmra.mxu0 %v2023
  %v2250 = vpop.f32.mrf.mxu0
  %v2251 = vadd.f32 0.0, %v2250
  %v2252 = vpop.f32.mrf.mxu0
  %v2253 = vadd.f32 0.0, %v2252
  %v2254 = vpop.f32.mrf.mxu0
  %v2255 = vpop.f32.mrf.mxu0
  %2256 = vdwg.mxu0
  %2257 = vmatprep.subr.bf16.mxu0 %v2183
  %2258 = vmatpush1.bf16.msra.mxu0 %v2182
  %2259 = vmatprep.subr.bf16.mxu0 %v2179
  %2260 = vmatpush1.bf16.msra.mxu0 %v2178
  %2261 = vmatprep.subr.bf16.mxu0 %v2175
  %2262 = vmatpush1.bf16.msra.mxu0 %v2174
  %2263 = vmatprep.subr.bf16.mxu0 %v2171
  %2264 = vmatpush1.bf16.msra.mxu0 %v2170
  %2265 = vmatprep.subr.bf16.mxu0 %v2167
  %2266 = vmatpush1.bf16.msra.mxu0 %v2166
  %2267 = vmatprep.subr.bf16.mxu0 %v2163
  %2268 = vmatpush1.bf16.msra.mxu0 %v2162
  %2269 = vmatprep.subr.bf16.mxu0 %v2159
  %2270 = vmatpush1.bf16.msra.mxu0 %v2158
  %2271 = vmatprep.subr.bf16.mxu0 %v2155
  %2272 = vmatpush1.bf16.msra.mxu0 %v2154
  %2273 = vmatprep.subr.bf16.mxu0 0
  %2274 = vmatpush2.bf16.msra.mxu0 0
  %2275 = vmatprep.subr.bf16.mxu0 0
  %2276 = vmatpush2.bf16.msra.mxu0 0
  %2277 = vmatprep.subr.bf16.mxu0 0
  %2278 = vmatpush2.bf16.msra.mxu0 0
  %2279 = vmatprep.subr.bf16.mxu0 0
  %2280 = vmatpush2.bf16.msra.mxu0 0
  %2281 = vmatprep.subr.bf16.mxu0 0
  %2282 = vmatpush2.bf16.msra.mxu0 0
  %2283 = vmatprep.subr.bf16.mxu0 0
  %2284 = vmatpush2.bf16.msra.mxu0 0
  %2285 = vmatprep.subr.bf16.mxu0 0
  %2286 = vmatpush2.bf16.msra.mxu0 0
  %2287 = vmatprep.subr.bf16.mxu0 0
  %2288 = vmatpush2.bf16.msra.mxu0 0
  %2289 = vmatprep.mubr.bf16.mxu0 0
  %2290 = vmatmul.mubr.bf16.gmra.mxu0 %v2023
  %v2291 = vpop.f32.mrf.mxu0
  %v2292 = vadd.f32 0.0, %v2291
  %v2293 = vpop.f32.mrf.mxu0
  %v2294 = vadd.f32 0.0, %v2293
  %v2295 = vpop.f32.mrf.mxu0
  %v2296 = vpop.f32.mrf.mxu0
  %2297 = vdwg.mxu0
  %v2302 = vcombine.low %v2251, %v2253
  %v2303 = vcombine.low %v2292, %v2294
  %v2305 = vunpack.c.l.s4 1983009808
  %v2306 = vunpack.c.0.s8 %v2305
  %v2307 = vlaneseq
  %v2308 = vshrl.u32 %v2307, 7
  %v2309 = vsub.s32 %v2306, %v2308
  %v2310 = vrot.slane %v2302, %v2309
  %v2312 = vunpack.c.l.s4 1983009808
  %v2313 = vunpack.c.0.s8 %v2312
  %v2314 = vlaneseq
  %v2315 = vshrl.u32 %v2314, 7
  %v2316 = vsub.s32 %v2313, %v2315
  %v2317 = vrot.slane %v2303, %v2316
  %v2318 = vcombine.low %v2310, %v2317
  %v2320 = vadd.f32 %v2022, %v2318
  %v2321 = vxor.u32 %v2320, 2147483648
  %v2322 = vmul.f32 %v2321, 1.442695
  %v2323 = vpow.pop %v2322
  %v2324 = vadd.f32 %v2323, 1.0
  %v2325 = vrcp.pop %v2324
  %v2326 = vmul.f32 1.0, %v2325
  %v2328 = vrot.slane %v2320, 2
  %v2330 = vxor.u32 %v2328, 2147483648
  %v2331 = vmul.f32 %v2330, 1.442695
  %v2332 = vpow.pop %v2331
  %v2333 = vadd.f32 %v2332, 1.0
  %v2334 = vrcp.pop %v2333
  %v2335 = vmul.f32 1.0, %v2334
  %v2336 = vrot.slane %v2320, 4
  %v2338 = vtanh.pop %v2336
  %v2339 = vrot.slane %v2320, 6
  %v2341 = vxor.u32 %v2339, 2147483648
  %v2342 = vmul.f32 %v2341, 1.442695
  %v2343 = vpow.pop %v2342
  %v2344 = vadd.f32 %v2343, 1.0
  %v2345 = vrcp.pop %v2344
  %v2346 = vmul.f32 1.0, %v2345
  %v2347 = vmul.f32 %v2335, %v2016
  %v2348 = vmul.f32 %v2326, %v2338
  %v2349 = vadd.f32 %v2347, %v2348
  %v2350 = vtanh.pop %v2349
  %v2351 = vmul.f32 %v2346, %v2350
  %s2352 = scalar_lea.vmem %s3, 12
  %2353 = vst [vmem:[%s2352] sm:$0x3] %v2351
  %s2354 = scalar_lea.vmem %s0, 56
  %v2355 = vld [vmem:[%s2354] sm:$0xff]
  %v2356 = vpack.c.bf16 %v2351, %v2351
  %v2357 = vld [vmem:[%s1] sm:$0xff]
  %v2358 = vld [vmem:[%s1 + $0x8] sm:$0xff]
  %v2359 = vld [vmem:[%s1 + $0x10] sm:$0xff]
  %v2360 = vld [vmem:[%s1 + $0x18] sm:$0xff]
  %v2361 = vld [vmem:[%s1 + $0x20] sm:$0xff]
  %v2362 = vld [vmem:[%s1 + $0x28] sm:$0xff]
  %v2363 = vld [vmem:[%s1 + $0x30] sm:$0xff]
  %v2364 = vld [vmem:[%s1 + $0x38] sm:$0xff]
  %v2365 = vld [vmem:[%s1 + $0x40] sm:$0xff]
  %v2366 = vld [vmem:[%s1 + $0x48] sm:$0xff]
  %v2367 = vld [vmem:[%s1 + $0x50] sm:$0xff]
  %v2368 = vld [vmem:[%s1 + $0x58] sm:$0xff]
  %v2369 = vld [vmem:[%s1 + $0x60] sm:$0xff]
  %v2370 = vld [vmem:[%s1 + $0x68] sm:$0xff]
  %v2371 = vld [vmem:[%s1 + $0x70] sm:$0xff]
  %v2372 = vld [vmem:[%s1 + $0x78] sm:$0xff]
  %v2373 = vld [vmem:[%s1 + $0x80] sm:$0xff]
  %v2374 = vld [vmem:[%s1 + $0x88] sm:$0xff]
  %v2375 = vld [vmem:[%s1 + $0x90] sm:$0xff]
  %v2376 = vld [vmem:[%s1 + $0x98] sm:$0xff]
  %v2377 = vld [vmem:[%s1 + $0xa0] sm:$0xff]
  %v2378 = vld [vmem:[%s1 + $0xa8] sm:$0xff]
  %v2379 = vld [vmem:[%s1 + $0xb0] sm:$0xff]
  %v2380 = vld [vmem:[%s1 + $0xb8] sm:$0xff]
  %v2381 = vld [vmem:[%s1 + $0xc0] sm:$0xff]
  %v2382 = vld [vmem:[%s1 + $0xc8] sm:$0xff]
  %v2383 = vld [vmem:[%s1 + $0xd0] sm:$0xff]
  %v2384 = vld [vmem:[%s1 + $0xd8] sm:$0xff]
  %v2385 = vld [vmem:[%s1 + $0xe0] sm:$0xff]
  %v2386 = vld [vmem:[%s1 + $0xe8] sm:$0xff]
  %v2387 = vld [vmem:[%s1 + $0xf0] sm:$0xff]
  %v2388 = vld [vmem:[%s1 + $0xf8] sm:$0xff]
  %v2421 = vunpack.c.l.b16 %v2357
  %v2422 = vunpack.c.h.b16 %v2357
  %v2423 = vunpack.c.l.b16 %v2358
  %v2424 = vunpack.c.h.b16 %v2358
  %v2425 = vunpack.c.l.b16 %v2359
  %v2426 = vunpack.c.h.b16 %v2359
  %v2427 = vunpack.c.l.b16 %v2360
  %v2428 = vunpack.c.h.b16 %v2360
  %v2429 = vunpack.c.l.b16 %v2361
  %v2430 = vunpack.c.h.b16 %v2361
  %v2431 = vunpack.c.l.b16 %v2362
  %v2432 = vunpack.c.h.b16 %v2362
  %v2433 = vunpack.c.l.b16 %v2363
  %v2434 = vunpack.c.h.b16 %v2363
  %v2435 = vunpack.c.l.b16 %v2364
  %v2436 = vunpack.c.h.b16 %v2364
  %v2437 = vunpack.c.l.b16 %v2365
  %v2438 = vunpack.c.h.b16 %v2365
  %v2439 = vunpack.c.l.b16 %v2366
  %v2440 = vunpack.c.h.b16 %v2366
  %v2441 = vunpack.c.l.b16 %v2367
  %v2442 = vunpack.c.h.b16 %v2367
  %v2443 = vunpack.c.l.b16 %v2368
  %v2444 = vunpack.c.h.b16 %v2368
  %v2445 = vunpack.c.l.b16 %v2369
  %v2446 = vunpack.c.h.b16 %v2369
  %v2447 = vunpack.c.l.b16 %v2370
  %v2448 = vunpack.c.h.b16 %v2370
  %v2449 = vunpack.c.l.b16 %v2371
  %v2450 = vunpack.c.h.b16 %v2371
  %v2451 = vunpack.c.l.b16 %v2372
  %v2452 = vunpack.c.h.b16 %v2372
  %v2453 = vunpack.c.l.b16 %v2373
  %v2454 = vunpack.c.h.b16 %v2373
  %v2455 = vunpack.c.l.b16 %v2374
  %v2456 = vunpack.c.h.b16 %v2374
  %v2457 = vunpack.c.l.b16 %v2375
  %v2458 = vunpack.c.h.b16 %v2375
  %v2459 = vunpack.c.l.b16 %v2376
  %v2460 = vunpack.c.h.b16 %v2376
  %v2461 = vunpack.c.l.b16 %v2377
  %v2462 = vunpack.c.h.b16 %v2377
  %v2463 = vunpack.c.l.b16 %v2378
  %v2464 = vunpack.c.h.b16 %v2378
  %v2465 = vunpack.c.l.b16 %v2379
  %v2466 = vunpack.c.h.b16 %v2379
  %v2467 = vunpack.c.l.b16 %v2380
  %v2468 = vunpack.c.h.b16 %v2380
  %v2469 = vunpack.c.l.b16 %v2381
  %v2470 = vunpack.c.h.b16 %v2381
  %v2471 = vunpack.c.l.b16 %v2382
  %v2472 = vunpack.c.h.b16 %v2382
  %v2473 = vunpack.c.l.b16 %v2383
  %v2474 = vunpack.c.h.b16 %v2383
  %v2475 = vunpack.c.l.b16 %v2384
  %v2476 = vunpack.c.h.b16 %v2384
  %v2477 = vunpack.c.l.b16 %v2385
  %v2478 = vunpack.c.h.b16 %v2385
  %v2479 = vunpack.c.l.b16 %v2386
  %v2480 = vunpack.c.h.b16 %v2386
  %v2481 = vunpack.c.l.b16 %v2387
  %v2482 = vunpack.c.h.b16 %v2387
  %v2483 = vunpack.c.l.b16 %v2388
  %v2484 = vunpack.c.h.b16 %v2388
  %v2485 = vpack.c.b16 %v2425, %v2421
  %v2486 = vpack.c.b16 %v2426, %v2422
  %v2487 = vpack.c.b16 %v2427, %v2423
  %v2488 = vpack.c.b16 %v2428, %v2424
  %v2489 = vpack.c.b16 %v2433, %v2429
  %v2490 = vpack.c.b16 %v2434, %v2430
  %v2491 = vpack.c.b16 %v2435, %v2431
  %v2492 = vpack.c.b16 %v2436, %v2432
  %v2493 = vpack.c.b16 %v2441, %v2437
  %v2494 = vpack.c.b16 %v2442, %v2438
  %v2495 = vpack.c.b16 %v2443, %v2439
  %v2496 = vpack.c.b16 %v2444, %v2440
  %v2497 = vpack.c.b16 %v2449, %v2445
  %v2498 = vpack.c.b16 %v2450, %v2446
  %v2499 = vpack.c.b16 %v2451, %v2447
  %v2500 = vpack.c.b16 %v2452, %v2448
  %v2501 = vpack.c.b16 %v2457, %v2453
  %v2502 = vpack.c.b16 %v2458, %v2454
  %v2503 = vpack.c.b16 %v2459, %v2455
  %v2504 = vpack.c.b16 %v2460, %v2456
  %v2505 = vpack.c.b16 %v2465, %v2461
  %v2506 = vpack.c.b16 %v2466, %v2462
  %v2507 = vpack.c.b16 %v2467, %v2463
  %v2508 = vpack.c.b16 %v2468, %v2464
  %v2509 = vpack.c.b16 %v2473, %v2469
  %v2510 = vpack.c.b16 %v2474, %v2470
  %v2511 = vpack.c.b16 %v2475, %v2471
  %v2512 = vpack.c.b16 %v2476, %v2472
  %v2513 = vpack.c.b16 %v2481, %v2477
  %v2514 = vpack.c.b16 %v2482, %v2478
  %v2515 = vpack.c.b16 %v2483, %v2479
  %v2516 = vpack.c.b16 %v2484, %v2480
  %2549 = vmatprep.subr.bf16.mxu0 %v2514
  %2550 = vmatpush1.bf16.msra.mxu0 %v2513
  %2551 = vmatprep.subr.bf16.mxu0 %v2510
  %2552 = vmatpush1.bf16.msra.mxu0 %v2509
  %2553 = vmatprep.subr.bf16.mxu0 %v2506
  %2554 = vmatpush1.bf16.msra.mxu0 %v2505
  %2555 = vmatprep.subr.bf16.mxu0 %v2502
  %2556 = vmatpush1.bf16.msra.mxu0 %v2501
  %2557 = vmatprep.subr.bf16.mxu0 %v2498
  %2558 = vmatpush1.bf16.msra.mxu0 %v2497
  %2559 = vmatprep.subr.bf16.mxu0 %v2494
  %2560 = vmatpush1.bf16.msra.mxu0 %v2493
  %2561 = vmatprep.subr.bf16.mxu0 %v2490
  %2562 = vmatpush1.bf16.msra.mxu0 %v2489
  %2563 = vmatprep.subr.bf16.mxu0 %v2486
  %2564 = vmatpush1.bf16.msra.mxu0 %v2485
  %2565 = vmatprep.subr.bf16.mxu0 0
  %2566 = vmatpush2.bf16.msra.mxu0 0
  %2567 = vmatprep.subr.bf16.mxu0 0
  %2568 = vmatpush2.bf16.msra.mxu0 0
  %2569 = vmatprep.subr.bf16.mxu0 0
  %2570 = vmatpush2.bf16.msra.mxu0 0
  %2571 = vmatprep.subr.bf16.mxu0 0
  %2572 = vmatpush2.bf16.msra.mxu0 0
  %2573 = vmatprep.subr.bf16.mxu0 0
  %2574 = vmatpush2.bf16.msra.mxu0 0
  %2575 = vmatprep.subr.bf16.mxu0 0
  %2576 = vmatpush2.bf16.msra.mxu0 0
  %2577 = vmatprep.subr.bf16.mxu0 0
  %2578 = vmatpush2.bf16.msra.mxu0 0
  %2579 = vmatprep.subr.bf16.mxu0 0
  %2580 = vmatpush2.bf16.msra.mxu0 0
  %2581 = vmatprep.mubr.bf16.mxu0 0
  %2582 = vmatmul.mubr.bf16.gmra.mxu0 %v2356
  %v2583 = vpop.f32.mrf.mxu0
  %v2584 = vadd.f32 0.0, %v2583
  %v2585 = vpop.f32.mrf.mxu0
  %v2586 = vadd.f32 0.0, %v2585
  %v2587 = vpop.f32.mrf.mxu0
  %v2588 = vpop.f32.mrf.mxu0
  %2589 = vdwg.mxu0
  %2590 = vmatprep.subr.bf16.mxu0 %v2516
  %2591 = vmatpush1.bf16.msra.mxu0 %v2515
  %2592 = vmatprep.subr.bf16.mxu0 %v2512
  %2593 = vmatpush1.bf16.msra.mxu0 %v2511
  %2594 = vmatprep.subr.bf16.mxu0 %v2508
  %2595 = vmatpush1.bf16.msra.mxu0 %v2507
  %2596 = vmatprep.subr.bf16.mxu0 %v2504
  %2597 = vmatpush1.bf16.msra.mxu0 %v2503
  %2598 = vmatprep.subr.bf16.mxu0 %v2500
  %2599 = vmatpush1.bf16.msra.mxu0 %v2499
  %2600 = vmatprep.subr.bf16.mxu0 %v2496
  %2601 = vmatpush1.bf16.msra.mxu0 %v2495
  %2602 = vmatprep.subr.bf16.mxu0 %v2492
  %2603 = vmatpush1.bf16.msra.mxu0 %v2491
  %2604 = vmatprep.subr.bf16.mxu0 %v2488
  %2605 = vmatpush1.bf16.msra.mxu0 %v2487
  %2606 = vmatprep.subr.bf16.mxu0 0
  %2607 = vmatpush2.bf16.msra.mxu0 0
  %2608 = vmatprep.subr.bf16.mxu0 0
  %2609 = vmatpush2.bf16.msra.mxu0 0
  %2610 = vmatprep.subr.bf16.mxu0 0
  %2611 = vmatpush2.bf16.msra.mxu0 0
  %2612 = vmatprep.subr.bf16.mxu0 0
  %2613 = vmatpush2.bf16.msra.mxu0 0
  %2614 = vmatprep.subr.bf16.mxu0 0
  %2615 = vmatpush2.bf16.msra.mxu0 0
  %2616 = vmatprep.subr.bf16.mxu0 0
  %2617 = vmatpush2.bf16.msra.mxu0 0
  %2618 = vmatprep.subr.bf16.mxu0 0
  %2619 = vmatpush2.bf16.msra.mxu0 0
  %2620 = vmatprep.subr.bf16.mxu0 0
  %2621 = vmatpush2.bf16.msra.mxu0 0
  %2622 = vmatprep.mubr.bf16.mxu0 0
  %2623 = vmatmul.mubr.bf16.gmra.mxu0 %v2356
  %v2624 = vpop.f32.mrf.mxu0
  %v2625 = vadd.f32 0.0, %v2624
  %v2626 = vpop.f32.mrf.mxu0
  %v2627 = vadd.f32 0.0, %v2626
  %v2628 = vpop.f32.mrf.mxu0
  %v2629 = vpop.f32.mrf.mxu0
  %2630 = vdwg.mxu0
  %v2635 = vcombine.low %v2584, %v2586
  %v2636 = vcombine.low %v2625, %v2627
  %v2638 = vunpack.c.l.s4 1983009808
  %v2639 = vunpack.c.0.s8 %v2638
  %v2640 = vlaneseq
  %v2641 = vshrl.u32 %v2640, 7
  %v2642 = vsub.s32 %v2639, %v2641
  %v2643 = vrot.slane %v2635, %v2642
  %v2645 = vunpack.c.l.s4 1983009808
  %v2646 = vunpack.c.0.s8 %v2645
  %v2647 = vlaneseq
  %v2648 = vshrl.u32 %v2647, 7
  %v2649 = vsub.s32 %v2646, %v2648
  %v2650 = vrot.slane %v2636, %v2649
  %v2651 = vcombine.low %v2643, %v2650
  %v2653 = vadd.f32 %v2355, %v2651
  %v2654 = vxor.u32 %v2653, 2147483648
  %v2655 = vmul.f32 %v2654, 1.442695
  %v2656 = vpow.pop %v2655
  %v2657 = vadd.f32 %v2656, 1.0
  %v2658 = vrcp.pop %v2657
  %v2659 = vmul.f32 1.0, %v2658
  %v2661 = vrot.slane %v2653, 2
  %v2663 = vxor.u32 %v2661, 2147483648
  %v2664 = vmul.f32 %v2663, 1.442695
  %v2665 = vpow.pop %v2664
  %v2666 = vadd.f32 %v2665, 1.0
  %v2667 = vrcp.pop %v2666
  %v2668 = vmul.f32 1.0, %v2667
  %v2669 = vrot.slane %v2653, 4
  %v2671 = vtanh.pop %v2669
  %v2672 = vrot.slane %v2653, 6
  %v2674 = vxor.u32 %v2672, 2147483648
  %v2675 = vmul.f32 %v2674, 1.442695
  %v2676 = vpow.pop %v2675
  %v2677 = vadd.f32 %v2676, 1.0
  %v2678 = vrcp.pop %v2677
  %v2679 = vmul.f32 1.0, %v2678
  %v2680 = vmul.f32 %v2668, %v2349
  %v2681 = vmul.f32 %v2659, %v2671
  %v2682 = vadd.f32 %v2680, %v2681
  %v2683 = vtanh.pop %v2682
  %v2684 = vmul.f32 %v2679, %v2683
  %s2685 = scalar_lea.vmem %s3, 14
  %2686 = vst [vmem:[%s2685] sm:$0x3] %v2684
  %2687 = vst [vmem:[#allocation2] sm:$0x3] %v2684
  %2688 = vst [vmem:[#allocation3] sm:$0x3] %v2682
  // Predicated region
  $region18: #{vib_lstm_forward.1} parent=0 // pred_check
    _
  $region19: #{vib_lstm_forward.1} parent=0 // pred_check_branch
    %2690 = sbr.rel (0) target = $region21
  $region20: #{vib_lstm_forward.1} parent=0 // pred_region
    _
  $region21: #{vib_lstm_forward.1} parent=0 // pred_fallthru
    _
  // Predicated region
  $region22: #{vib_lstm_forward.1} parent=0 // pred_check
    _
  $region23: #{vib_lstm_forward.1} parent=0 // pred_check_branch
    %2692 = sbr.rel (0) target = $region25
  $region24: #{vib_lstm_forward.1} parent=0 // pred_region
    _
  $region25: #{vib_lstm_forward.1} parent=0 // pred_fallthru
    _

</llo_original>
